<compile_context>
chip_gen: v6e
topology: v6e:2x2x1
jax: 0.10.0
libtpu: 0.0.40
codegen_flags: <defaults>
</compile_context>

<pallas_src>
import functools

import jax
import jax.numpy as jnp
from jax.experimental import pallas as pl
from jax.experimental.pallas import tpu as pltpu

HIDDEN_PAD = 128  # physical hidden width inside the kernel (logical width 100)
LANE = 128


def _round_up(x, m):
    return (x + m - 1) // m * m


def _num_tensorcores():
    """TensorCores per JAX device (v7x/v4 megacore = 2, v5e/v6e = 1)."""
    try:
        kind = jax.devices()[0].device_kind.lower()
    except Exception:
        return 1
    if "v7" in kind or "v4" in kind:
        return 2
    return 1


def mesh_kernel(w_ref,
                w3_ref, b3_ref,
                w4_ref, b4_ref,
                w5_ref, b5_ref,
                w6_ref, b6_ref,
                w7_ref,
                o_ref,
                *, sub_n, n_sub):
    bf16 = jnp.bfloat16
    # Small per-layer constants (0.5 KiB each) hoisted out of the loop.
    w3 = w3_ref[...]          # (1, 128) f32
    b3 = b3_ref[...]
    b4 = b4_ref[...]
    b5 = b5_ref[...]
    b6 = b6_ref[...]

    def body(s, carry):
        r = pl.multiple_of(s * sub_n, sub_n)
        x = w_ref[pl.ds(r, sub_n), :]                     # (sub_n, 1) f32
        # Layer 3: (sub_n,1) @ (1,128) is an outer product -> VPU broadcast mul.
        h = jnp.tanh(x * w3 + b3)                         # (sub_n, 128) f32
        # Hidden layers: bf16 operands, f32 accumulate, f32 bias+tanh.
        h = jnp.tanh(jnp.dot(h.astype(bf16), w4_ref[...],
                             preferred_element_type=jnp.float32) + b4)
        h = jnp.tanh(jnp.dot(h.astype(bf16), w5_ref[...],
                             preferred_element_type=jnp.float32) + b5)
        h = jnp.tanh(jnp.dot(h.astype(bf16), w6_ref[...],
                             preferred_element_type=jnp.float32) + b6)
        # Final layer (no bias), lane-dense f32 store.
        o_ref[pl.ds(r, sub_n), :] = jnp.dot(
            h.astype(bf16), w7_ref[...], preferred_element_type=jnp.float32)
        return carry

    jax.lax.fori_loop(0, n_sub, body, 0, unroll=True)


def mesh_forward(w, padded_params, out_dim, *, tile_n=2048, sub_n=256):
    """w: (N, 1) float32.  Returns (N, out_dim) float32."""
    w3, b3, w4, b4, w5, b5, w6, b6, w7 = padded_params
    N = w.shape[0]
    out_pad = w7.shape[1]

    # Sub-block size (rows processed per inner unrolled step) and batch tile.
    sub_n = max(8, _round_up(sub_n, 8))
    tile_n = max(sub_n, _round_up(tile_n, sub_n))

    # Only force a multi-step grid on parts with >1 TensorCore; on single-TC
    # parts (v5e/v6e) the grid is a serial loop, so use one big tile when
    # N fits.
    num_tc = _num_tensorcores()
    per_step = pl.cdiv(N, num_tc) if num_tc > 1 else N
    tile_n = min(tile_n, _round_up(max(per_step, 8), sub_n))
    n_sub = tile_n // sub_n

    n_pad = _round_up(N, tile_n)
    if n_pad != N:
        w = jnp.pad(w, ((0, n_pad - N), (0, 0)))
    grid = (n_pad // tile_n,)

    def full_spec(shape):
        return pl.BlockSpec(shape, lambda i: (0,) * len(shape))

    # Weights stay resident (constant index maps) -> counted once.
    weight_bytes = sum(int(p.size) * p.dtype.itemsize for p in padded_params)
    cost = pl.CostEstimate(
        flops=2 * n_pad * (HIDDEN_PAD
                           + 3 * HIDDEN_PAD * HIDDEN_PAD
                           + HIDDEN_PAD * out_pad),
        transcendentals=4 * n_pad * HIDDEN_PAD,
        bytes_accessed=n_pad * 4 * (1 + out_pad) + weight_bytes,
    )

    kernel = functools.partial(mesh_kernel, sub_n=sub_n, n_sub=n_sub)

    out = pl.pallas_call(
        kernel,
        out_shape=jax.ShapeDtypeStruct((n_pad, out_pad), jnp.float32),
        grid_spec=pltpu.PrefetchScalarGridSpec(
            num_scalar_prefetch=0,
            grid=grid,
            in_specs=[
                pl.BlockSpec((tile_n, 1), lambda i: (i, 0)),   # batch input
                full_spec(w3.shape), full_spec(b3.shape),      # constant-index
                full_spec(w4.shape), full_spec(b4.shape),      # weight blocks
                full_spec(w5.shape), full_spec(b5.shape),
                full_spec(w6.shape), full_spec(b6.shape),
                full_spec(w7.shape),
            ],
            out_specs=pl.BlockSpec((tile_n, out_pad), lambda i: (i, 0)),
        ),
        compiler_params=pltpu.CompilerParams(
            dimension_semantics=("parallel",)),
        cost_estimate=cost,
    )(w, w3, b3, w4, b4, w5, b5, w6, b6, w7)

    return out[:N, :out_dim]


def init_params(key, hidden_dim, output_dim):
    """nn.Linear-style U(-1/sqrt(fan_in), 1/sqrt(fan_in)) init.
    Weights stored transposed as (in_dim, out_dim); biases as (1, out_dim)."""
    dims = [(1, 100), (100, 100), (100, 100), (100, 100),
            (100, hidden_dim * output_dim)]
    has_bias = [True, True, True, True, False]
    params = []
    for (fan_in, fan_out), bias in zip(dims, has_bias):
        key, kw, kb = jax.random.split(key, 3)
        bound = 1.0 / jnp.sqrt(jnp.float32(fan_in))
        W = jax.random.uniform(kw, (fan_in, fan_out), jnp.float32, -bound, bound)
        if bias:
            b = jax.random.uniform(kb, (1, fan_out), jnp.float32, -bound, bound)
            params.append((W, b))
        else:
            params.append(W)
    return params


def pad_params(params, hidden_pad=HIDDEN_PAD, lane=LANE):
    """Zero-pad hidden width (100 -> hidden_pad) and final width to a lane
    multiple; cast the MXU-bound weights (w4..w7) to bf16.  Zero padding is
    numerically inert (tanh(0)=0, zero weight rows/cols)."""
    (w3, b3), (w4, b4), (w5, b5), (w6, b6), w7 = params
    h = w3.shape[1]
    ph = hidden_pad - h
    out_dim = w7.shape[1]
    po = _round_up(out_dim, lane) - out_dim
    bf16 = jnp.bfloat16
    return (
        jnp.pad(w3, ((0, 0), (0, ph))),                       # layer 3 on VPU, f32
        jnp.pad(b3, ((0, 0), (0, ph))),
        jnp.pad(w4, ((0, ph), (0, ph))).astype(bf16),
        jnp.pad(b4, ((0, 0), (0, ph))),
        jnp.pad(w5, ((0, ph), (0, ph))).astype(bf16),
        jnp.pad(b5, ((0, 0), (0, ph))),
        jnp.pad(w6, ((0, ph), (0, ph))).astype(bf16),
        jnp.pad(b6, ((0, 0), (0, ph))),
        jnp.pad(w7, ((0, ph), (0, po))).astype(bf16),
    )


def mesh_ref(w, params):
    """Plain-JAX f32 reference of the torch forward, for correctness checking."""
    (w3, b3), (w4, b4), (w5, b5), (w6, b6), w7 = params
    h = jnp.tanh(w @ w3 + b3)
    h = jnp.tanh(h @ w4 + b4)
    h = jnp.tanh(h @ w5 + b5)
    h = jnp.tanh(h @ w6 + b6)
    return h @ w7


if __name__ == "__main__":
    hidden_dim, output_dim = 32, 4       # final layer width = 128
    N = 300                              # query points (not a tile multiple)

    key = jax.random.PRNGKey(0)
    key, kin = jax.random.split(key)
    params = init_params(key, hidden_dim, output_dim)
    padded = pad_params(params)
    w_in = jax.random.normal(kin, (N, 1), jnp.float32)

    out_dim = hidden_dim * output_dim
    out = mesh_forward(w_in, padded, out_dim)
    out = jax.block_until_ready(out)

    ref = mesh_ref(w_in, params)
    assert out.shape == (N, out_dim)
    # bf16 matmul operands with f32 accumulation -> relaxed tolerance.
    assert jnp.allclose(out, ref, atol=2e-2, rtol=2e-2), "mismatch vs reference"

    print("KERNEL_OK")
</pallas_src>

<mosaic_0001>
module attributes {stable_mosaic.version = 11 : i64} {
  func.func @mesh_kernel(%arg0: i32, %arg1: memref<512x1xf32, #tpu.memory_space<vmem>>, %arg2: memref<1x128xf32, #tpu.memory_space<vmem>>, %arg3: memref<1x128xf32, #tpu.memory_space<vmem>>, %arg4: memref<128x128xbf16, #tpu.memory_space<vmem>>, %arg5: memref<1x128xf32, #tpu.memory_space<vmem>>, %arg6: memref<128x128xbf16, #tpu.memory_space<vmem>>, %arg7: memref<1x128xf32, #tpu.memory_space<vmem>>, %arg8: memref<128x128xbf16, #tpu.memory_space<vmem>>, %arg9: memref<1x128xf32, #tpu.memory_space<vmem>>, %arg10: memref<128x128xbf16, #tpu.memory_space<vmem>>, %arg11: memref<512x128xf32, #tpu.memory_space<vmem>>) attributes {dimension_semantics = [#tpu.dimension_semantics<parallel>], iteration_bounds = array<i64: 1>, scalar_prefetch = 0 : i64, scratch_operands = 0 : i64, tpu.core_type = #tpu.core_type<tc>, window_params = [{transform_indices = @transform_0, window_bounds = array<i64: 512, 1>}, {pipeline_mode = #tpu.pipeline_mode<synchronous>, transform_indices = @transform_1, window_bounds = array<i64: 1, 128>}, {pipeline_mode = #tpu.pipeline_mode<synchronous>, transform_indices = @transform_2, window_bounds = array<i64: 1, 128>}, {pipeline_mode = #tpu.pipeline_mode<synchronous>, transform_indices = @transform_3, window_bounds = array<i64: 128, 128>}, {pipeline_mode = #tpu.pipeline_mode<synchronous>, transform_indices = @transform_4, window_bounds = array<i64: 1, 128>}, {pipeline_mode = #tpu.pipeline_mode<synchronous>, transform_indices = @transform_5, window_bounds = array<i64: 128, 128>}, {pipeline_mode = #tpu.pipeline_mode<synchronous>, transform_indices = @transform_6, window_bounds = array<i64: 1, 128>}, {pipeline_mode = #tpu.pipeline_mode<synchronous>, transform_indices = @transform_7, window_bounds = array<i64: 128, 128>}, {pipeline_mode = #tpu.pipeline_mode<synchronous>, transform_indices = @transform_8, window_bounds = array<i64: 1, 128>}, {pipeline_mode = #tpu.pipeline_mode<synchronous>, transform_indices = @transform_9, window_bounds = array<i64: 128, 128>}, {transform_indices = @transform_10, window_bounds = array<i64: 512, 128>}]} {
    %c0 = arith.constant 0 : index
    %c0_0 = arith.constant 0 : index
    %0 = vector.load %arg2[%c0, %c0_0] : memref<1x128xf32, #tpu.memory_space<vmem>>, vector<1x128xf32>
    %c0_1 = arith.constant 0 : index
    %c0_2 = arith.constant 0 : index
    %1 = vector.load %arg3[%c0_1, %c0_2] : memref<1x128xf32, #tpu.memory_space<vmem>>, vector<1x128xf32>
    %c0_3 = arith.constant 0 : index
    %c0_4 = arith.constant 0 : index
    %2 = vector.load %arg5[%c0_3, %c0_4] : memref<1x128xf32, #tpu.memory_space<vmem>>, vector<1x128xf32>
    %c0_5 = arith.constant 0 : index
    %c0_6 = arith.constant 0 : index
    %3 = vector.load %arg7[%c0_5, %c0_6] : memref<1x128xf32, #tpu.memory_space<vmem>>, vector<1x128xf32>
    %c0_7 = arith.constant 0 : index
    %c0_8 = arith.constant 0 : index
    %4 = vector.load %arg9[%c0_7, %c0_8] : memref<1x128xf32, #tpu.memory_space<vmem>>, vector<1x128xf32>
    %c0_i32 = arith.constant 0 : i32
    %c256_i32 = arith.constant 256 : i32
    %5 = arith.muli %c0_i32, %c256_i32 : i32
    %6 = tpu.assume_multiple %5, 256 : i32
    %7 = arith.index_cast %6 : i32 to index
    %c0_9 = arith.constant 0 : index
    %8 = vector.load %arg1[%7, %c0_9] : memref<512x1xf32, #tpu.memory_space<vmem>>, vector<256x1xf32>
    %9 = vector.broadcast %8 : vector<256x1xf32> to vector<256x128xf32>
    %10 = vector.broadcast %0 : vector<1x128xf32> to vector<256x128xf32>
    %11 = arith.mulf %9, %10 : vector<256x128xf32>
    %12 = vector.broadcast %1 : vector<1x128xf32> to vector<256x128xf32>
    %13 = arith.addf %11, %12 : vector<256x128xf32>
    %14 = math.tanh %13 : vector<256x128xf32>
    %15 = arith.truncf %14 : vector<256x128xf32> to vector<256x128xbf16>
    %c0_10 = arith.constant 0 : index
    %c0_11 = arith.constant 0 : index
    %16 = vector.load %arg4[%c0_10, %c0_11] : memref<128x128xbf16, #tpu.memory_space<vmem>>, vector<128x128xbf16>
    %cst = arith.constant dense<0.000000e+00> : vector<256x128xf32>
    %17 = tpu.matmul %15, %16, %cst {dimension_numbers = #tpu.dot_dimension_numbers<[1], [0], [0], [1], [0, 0, 1, 1], [], []>} : vector<256x128xbf16>, vector<128x128xbf16>, vector<256x128xf32> -> vector<256x128xf32>
    %18 = vector.broadcast %2 : vector<1x128xf32> to vector<256x128xf32>
    %19 = arith.addf %17, %18 : vector<256x128xf32>
    %20 = math.tanh %19 : vector<256x128xf32>
    %21 = arith.truncf %20 : vector<256x128xf32> to vector<256x128xbf16>
    %c0_12 = arith.constant 0 : index
    %c0_13 = arith.constant 0 : index
    %22 = vector.load %arg6[%c0_12, %c0_13] : memref<128x128xbf16, #tpu.memory_space<vmem>>, vector<128x128xbf16>
    %cst_14 = arith.constant dense<0.000000e+00> : vector<256x128xf32>
    %23 = tpu.matmul %21, %22, %cst_14 {dimension_numbers = #tpu.dot_dimension_numbers<[1], [0], [0], [1], [0, 0, 1, 1], [], []>} : vector<256x128xbf16>, vector<128x128xbf16>, vector<256x128xf32> -> vector<256x128xf32>
    %24 = vector.broadcast %3 : vector<1x128xf32> to vector<256x128xf32>
    %25 = arith.addf %23, %24 : vector<256x128xf32>
    %26 = math.tanh %25 : vector<256x128xf32>
    %27 = arith.truncf %26 : vector<256x128xf32> to vector<256x128xbf16>
    %c0_15 = arith.constant 0 : index
    %c0_16 = arith.constant 0 : index
    %28 = vector.load %arg8[%c0_15, %c0_16] : memref<128x128xbf16, #tpu.memory_space<vmem>>, vector<128x128xbf16>
    %cst_17 = arith.constant dense<0.000000e+00> : vector<256x128xf32>
    %29 = tpu.matmul %27, %28, %cst_17 {dimension_numbers = #tpu.dot_dimension_numbers<[1], [0], [0], [1], [0, 0, 1, 1], [], []>} : vector<256x128xbf16>, vector<128x128xbf16>, vector<256x128xf32> -> vector<256x128xf32>
    %30 = vector.broadcast %4 : vector<1x128xf32> to vector<256x128xf32>
    %31 = arith.addf %29, %30 : vector<256x128xf32>
    %32 = math.tanh %31 : vector<256x128xf32>
    %33 = arith.truncf %32 : vector<256x128xf32> to vector<256x128xbf16>
    %c0_18 = arith.constant 0 : index
    %c0_19 = arith.constant 0 : index
    %34 = vector.load %arg10[%c0_18, %c0_19] : memref<128x128xbf16, #tpu.memory_space<vmem>>, vector<128x128xbf16>
    %cst_20 = arith.constant dense<0.000000e+00> : vector<256x128xf32>
    %35 = tpu.matmul %33, %34, %cst_20 {dimension_numbers = #tpu.dot_dimension_numbers<[1], [0], [0], [1], [0, 0, 1, 1], [], []>} : vector<256x128xbf16>, vector<128x128xbf16>, vector<256x128xf32> -> vector<256x128xf32>
    %36 = arith.index_cast %6 : i32 to index
    %c0_21 = arith.constant 0 : index
    %37 = vector.load %arg11[%36, %c0_21] : memref<512x128xf32, #tpu.memory_space<vmem>>, vector<256x128xf32>
    tpu.vector_store %arg11[%36, %c0_21], %35 {strides = array<i32>} : memref<512x128xf32, #tpu.memory_space<vmem>>, vector<256x128xf32>,
    %c1_i32 = arith.constant 1 : i32
    %c256_i32_22 = arith.constant 256 : i32
    %38 = arith.muli %c1_i32, %c256_i32_22 : i32
    %39 = tpu.assume_multiple %38, 256 : i32
    %40 = arith.index_cast %39 : i32 to index
    %c0_23 = arith.constant 0 : index
    %41 = vector.load %arg1[%40, %c0_23] : memref<512x1xf32, #tpu.memory_space<vmem>>, vector<256x1xf32>
    %42 = vector.broadcast %41 : vector<256x1xf32> to vector<256x128xf32>
    %43 = vector.broadcast %0 : vector<1x128xf32> to vector<256x128xf32>
    %44 = arith.mulf %42, %43 : vector<256x128xf32>
    %45 = vector.broadcast %1 : vector<1x128xf32> to vector<256x128xf32>
    %46 = arith.addf %44, %45 : vector<256x128xf32>
    %47 = math.tanh %46 : vector<256x128xf32>
    %48 = arith.truncf %47 : vector<256x128xf32> to vector<256x128xbf16>
    %c0_24 = arith.constant 0 : index
    %c0_25 = arith.constant 0 : index
    %49 = vector.load %arg4[%c0_24, %c0_25] : memref<128x128xbf16, #tpu.memory_space<vmem>>, vector<128x128xbf16>
    %cst_26 = arith.constant dense<0.000000e+00> : vector<256x128xf32>
    %50 = tpu.matmul %48, %49, %cst_26 {dimension_numbers = #tpu.dot_dimension_numbers<[1], [0], [0], [1], [0, 0, 1, 1], [], []>} : vector<256x128xbf16>, vector<128x128xbf16>, vector<256x128xf32> -> vector<256x128xf32>
    %51 = vector.broadcast %2 : vector<1x128xf32> to vector<256x128xf32>
    %52 = arith.addf %50, %51 : vector<256x128xf32>
    %53 = math.tanh %52 : vector<256x128xf32>
    %54 = arith.truncf %53 : vector<256x128xf32> to vector<256x128xbf16>
    %c0_27 = arith.constant 0 : index
    %c0_28 = arith.constant 0 : index
    %55 = vector.load %arg6[%c0_27, %c0_28] : memref<128x128xbf16, #tpu.memory_space<vmem>>, vector<128x128xbf16>
    %cst_29 = arith.constant dense<0.000000e+00> : vector<256x128xf32>
    %56 = tpu.matmul %54, %55, %cst_29 {dimension_numbers = #tpu.dot_dimension_numbers<[1], [0], [0], [1], [0, 0, 1, 1], [], []>} : vector<256x128xbf16>, vector<128x128xbf16>, vector<256x128xf32> -> vector<256x128xf32>
    %57 = vector.broadcast %3 : vector<1x128xf32> to vector<256x128xf32>
    %58 = arith.addf %56, %57 : vector<256x128xf32>
    %59 = math.tanh %58 : vector<256x128xf32>
    %60 = arith.truncf %59 : vector<256x128xf32> to vector<256x128xbf16>
    %c0_30 = arith.constant 0 : index
    %c0_31 = arith.constant 0 : index
    %61 = vector.load %arg8[%c0_30, %c0_31] : memref<128x128xbf16, #tpu.memory_space<vmem>>, vector<128x128xbf16>
    %cst_32 = arith.constant dense<0.000000e+00> : vector<256x128xf32>
    %62 = tpu.matmul %60, %61, %cst_32 {dimension_numbers = #tpu.dot_dimension_numbers<[1], [0], [0], [1], [0, 0, 1, 1], [], []>} : vector<256x128xbf16>, vector<128x128xbf16>, vector<256x128xf32> -> vector<256x128xf32>
    %63 = vector.broadcast %4 : vector<1x128xf32> to vector<256x128xf32>
    %64 = arith.addf %62, %63 : vector<256x128xf32>
    %65 = math.tanh %64 : vector<256x128xf32>
    %66 = arith.truncf %65 : vector<256x128xf32> to vector<256x128xbf16>
    %c0_33 = arith.constant 0 : index
    %c0_34 = arith.constant 0 : index
    %67 = vector.load %arg10[%c0_33, %c0_34] : memref<128x128xbf16, #tpu.memory_space<vmem>>, vector<128x128xbf16>
    %cst_35 = arith.constant dense<0.000000e+00> : vector<256x128xf32>
    %68 = tpu.matmul %66, %67, %cst_35 {dimension_numbers = #tpu.dot_dimension_numbers<[1], [0], [0], [1], [0, 0, 1, 1], [], []>} : vector<256x128xbf16>, vector<128x128xbf16>, vector<256x128xf32> -> vector<256x128xf32>
    %69 = arith.index_cast %39 : i32 to index
    %c0_36 = arith.constant 0 : index
    %70 = vector.load %arg11[%69, %c0_36] : memref<512x128xf32, #tpu.memory_space<vmem>>, vector<256x128xf32>
    tpu.vector_store %arg11[%69, %c0_36], %68 {strides = array<i32>} : memref<512x128xf32, #tpu.memory_space<vmem>>, vector<256x128xf32>,
    %c2_i32 = arith.constant 2 : i32
    return
  }
  func.func @transform_0(%arg0: i32) -> (i32, i32) {
    %c0_i32 = arith.constant 0 : i32
    %c0_i32_0 = arith.constant 0 : i32
    return %arg0, %c0_i32 : i32, i32
  }
  func.func @transform_1(%arg0: i32) -> (i32, i32) {
    %c0_i32 = arith.constant 0 : i32
    %c0_i32_0 = arith.constant 0 : i32
    %c0_i32_1 = arith.constant 0 : i32
    return %c0_i32, %c0_i32_0 : i32, i32
  }
  func.func @transform_2(%arg0: i32) -> (i32, i32) {
    %c0_i32 = arith.constant 0 : i32
    %c0_i32_0 = arith.constant 0 : i32
    %c0_i32_1 = arith.constant 0 : i32
    return %c0_i32, %c0_i32_0 : i32, i32
  }
  func.func @transform_3(%arg0: i32) -> (i32, i32) {
    %c0_i32 = arith.constant 0 : i32
    %c0_i32_0 = arith.constant 0 : i32
    %c0_i32_1 = arith.constant 0 : i32
    return %c0_i32, %c0_i32_0 : i32, i32
  }
  func.func @transform_4(%arg0: i32) -> (i32, i32) {
    %c0_i32 = arith.constant 0 : i32
    %c0_i32_0 = arith.constant 0 : i32
    %c0_i32_1 = arith.constant 0 : i32
    return %c0_i32, %c0_i32_0 : i32, i32
  }
  func.func @transform_5(%arg0: i32) -> (i32, i32) {
    %c0_i32 = arith.constant 0 : i32
    %c0_i32_0 = arith.constant 0 : i32
    %c0_i32_1 = arith.constant 0 : i32
    return %c0_i32, %c0_i32_0 : i32, i32
  }
  func.func @transform_6(%arg0: i32) -> (i32, i32) {
    %c0_i32 = arith.constant 0 : i32
    %c0_i32_0 = arith.constant 0 : i32
    %c0_i32_1 = arith.constant 0 : i32
    return %c0_i32, %c0_i32_0 : i32, i32
  }
  func.func @transform_7(%arg0: i32) -> (i32, i32) {
    %c0_i32 = arith.constant 0 : i32
    %c0_i32_0 = arith.constant 0 : i32
    %c0_i32_1 = arith.constant 0 : i32
    return %c0_i32, %c0_i32_0 : i32, i32
  }
  func.func @transform_8(%arg0: i32) -> (i32, i32) {
    %c0_i32 = arith.constant 0 : i32
    %c0_i32_0 = arith.constant 0 : i32
    %c0_i32_1 = arith.constant 0 : i32
    return %c0_i32, %c0_i32_0 : i32, i32
  }
  func.func @transform_9(%arg0: i32) -> (i32, i32) {
    %c0_i32 = arith.constant 0 : i32
    %c0_i32_0 = arith.constant 0 : i32
    %c0_i32_1 = arith.constant 0 : i32
    return %c0_i32, %c0_i32_0 : i32, i32
  }
  func.func @transform_10(%arg0: i32) -> (i32, i32) {
    %c0_i32 = arith.constant 0 : i32
    %c0_i32_0 = arith.constant 0 : i32
    return %arg0, %c0_i32 : i32, i32
  }
}

</mosaic_0001>

<llo_original>
// kernel: tpu_custom_call.1
$region0: #{tpu_custom_call.1}
  #allocation0 [shape = 'u32[]', space=smem, size = 0x4, offset = 0x4, fixed_abs, tag = 'smem constant byte address 0x4 - core index']
  #allocation1 [shape = 'u32[144,128]{1,0:T(1,128)}', space=vmem, size = 0x12000, scoped, tag = 'internal scratch']
  %s0 = inlined_call_operand.vmem [shape: f32[512,1], index: 0, kind: input, shape index: {}]
  %s1 = inlined_call_operand.vmem [shape: f32[1,128], index: 1, kind: input, shape index: {}]
  %s2 = inlined_call_operand.vmem [shape: f32[1,128], index: 2, kind: input, shape index: {}]
  %s3 = inlined_call_operand.vmem [shape: bf16[128,128], index: 3, kind: input, shape index: {}]
  %s4 = inlined_call_operand.vmem [shape: f32[1,128], index: 4, kind: input, shape index: {}]
  %s5 = inlined_call_operand.vmem [shape: bf16[128,128], index: 5, kind: input, shape index: {}]
  %s6 = inlined_call_operand.vmem [shape: f32[1,128], index: 6, kind: input, shape index: {}]
  %s7 = inlined_call_operand.vmem [shape: bf16[128,128], index: 7, kind: input, shape index: {}]
  %s8 = inlined_call_operand.vmem [shape: f32[1,128], index: 8, kind: input, shape index: {}]
  %s9 = inlined_call_operand.vmem [shape: bf16[128,128], index: 9, kind: input, shape index: {}]
  %s10 = inlined_call_operand.hbm [shape: f32[512,128], index: 10, kind: output, shape index: {}]
  %s11 = sld [smem:[#allocation0]]
  $region50: #{tpu_custom_call.1} parent=0
    _
  %s13 = ssub.s32 1, %s11
  %s14 = scalar_select 0, %s13, %s11
  $region1: #{tpu_custom_call.1} parent=0
    #allocation2 [shape = 'u8[262144]{0}', space=vmem, size = 0x40000, scoped, tag = 'output window, operand 0, single buffered']
    #allocation3 [shape = 's32[1]{0}', space=sflag, size = 0x4, scoped, tag = 'scoped memory for tpu_custom_call.1']
    %15 = vsyncpa [#allocation3], 0
    // Predicated region
    $region2: #{tpu_custom_call.1} parent=1 // pred_check
      _
    $region3: #{tpu_custom_call.1} parent=1 // pred_check_branch
      %17 = sbr.rel (0) target = $region5
    $region4: #{tpu_custom_call.1} parent=1 // pred_region
      _
    $region5: #{tpu_custom_call.1} parent=1 // pred_fallthru
      _
    // Predicated region
    $region6: #{tpu_custom_call.1} parent=1 // pred_check
      _
    $region7: #{tpu_custom_call.1} parent=1 // pred_check_branch
      %19 = sbr.rel (0) target = $region9
    $region8: #{tpu_custom_call.1} parent=1 // pred_region
      _
    $region9: #{tpu_custom_call.1} parent=1 // pred_fallthru
      _
    // Predicated region
    $region10: #{tpu_custom_call.1} parent=1 // pred_check
      _
    $region11: #{tpu_custom_call.1} parent=1 // pred_check_branch
      %21 = sbr.rel (0) target = $region13
    $region12: #{tpu_custom_call.1} parent=1 // pred_region
      _
    $region13: #{tpu_custom_call.1} parent=1 // pred_fallthru
      _
    // Predicated region
    $region14: #{tpu_custom_call.1} parent=1 // pred_check
      _
    $region15: #{tpu_custom_call.1} parent=1 // pred_check_branch
      %23 = sbr.rel (0) target = $region17
    $region16: #{tpu_custom_call.1} parent=1 // pred_region
      _
    $region17: #{tpu_custom_call.1} parent=1 // pred_fallthru
      _
    // Predicated region
    $region18: #{tpu_custom_call.1} parent=1 // pred_check
      _
    $region19: #{tpu_custom_call.1} parent=1 // pred_check_branch
      %25 = sbr.rel (0) target = $region21
    $region20: #{tpu_custom_call.1} parent=1 // pred_region
      _
    $region21: #{tpu_custom_call.1} parent=1 // pred_fallthru
      _
    // Predicated region
    $region22: #{tpu_custom_call.1} parent=1 // pred_check
      _
    $region23: #{tpu_custom_call.1} parent=1 // pred_check_branch
      %27 = sbr.rel (0) target = $region25
    $region24: #{tpu_custom_call.1} parent=1 // pred_region
      _
    $region25: #{tpu_custom_call.1} parent=1 // pred_fallthru
      _
    // Predicated region
    $region26: #{tpu_custom_call.1} parent=1 // pred_check
      _
    $region27: #{tpu_custom_call.1} parent=1 // pred_check_branch
      %29 = sbr.rel (0) target = $region29
    $region28: #{tpu_custom_call.1} parent=1 // pred_region
      _
    $region29: #{tpu_custom_call.1} parent=1 // pred_fallthru
      _
    // Predicated region
    $region30: #{tpu_custom_call.1} parent=1 // pred_check
      _
    $region31: #{tpu_custom_call.1} parent=1 // pred_check_branch
      %31 = sbr.rel (0) target = $region33
    $region32: #{tpu_custom_call.1} parent=1 // pred_region
      _
    $region33: #{tpu_custom_call.1} parent=1 // pred_fallthru
      _
    // Predicated region
    $region34: #{tpu_custom_call.1} parent=1 // pred_check
      _
    $region35: #{tpu_custom_call.1} parent=1 // pred_check_branch
      %33 = sbr.rel (0) target = $region37
    $region36: #{tpu_custom_call.1} parent=1 // pred_region
      _
    $region37: #{tpu_custom_call.1} parent=1 // pred_fallthru
      _
    // Predicated region
    $region38: #{tpu_custom_call.1} parent=1 // pred_check
      _
    $region39: #{tpu_custom_call.1} parent=1 // pred_check_branch
      %35 = sbr.rel (0) target = $region41
    $region40: #{tpu_custom_call.1} parent=1 // pred_region
      _
    $region41: #{tpu_custom_call.1} parent=1 // pred_fallthru
      _
    %v37 = vld [vmem:[%s1] sm:$0x1]
    %v38 = vld [vmem:[%s2] sm:$0x1]
    %v39 = vld [vmem:[%s4] sm:$0x1]
    %v40 = vld [vmem:[%s6] sm:$0x1]
    %v41 = vld [vmem:[%s8] sm:$0x1]
    %v42 = vld [vmem:[%s0] sm:$0xff]
    %v43 = vld [vmem:[%s0 + $0x8] sm:$0xff]
    %v44 = vld [vmem:[%s0 + $0x10] sm:$0xff]
    %v45 = vld [vmem:[%s0 + $0x18] sm:$0xff]
    %v46 = vld [vmem:[%s0 + $0x20] sm:$0xff]
    %v47 = vld [vmem:[%s0 + $0x28] sm:$0xff]
    %v48 = vld [vmem:[%s0 + $0x30] sm:$0xff]
    %v49 = vld [vmem:[%s0 + $0x38] sm:$0xff]
    %v50 = vld [vmem:[%s0 + $0x40] sm:$0xff]
    %v51 = vld [vmem:[%s0 + $0x48] sm:$0xff]
    %v52 = vld [vmem:[%s0 + $0x50] sm:$0xff]
    %v53 = vld [vmem:[%s0 + $0x58] sm:$0xff]
    %v54 = vld [vmem:[%s0 + $0x60] sm:$0xff]
    %v55 = vld [vmem:[%s0 + $0x68] sm:$0xff]
    %v56 = vld [vmem:[%s0 + $0x70] sm:$0xff]
    %v57 = vld [vmem:[%s0 + $0x78] sm:$0xff]
    %v58 = vld [vmem:[%s0 + $0x80] sm:$0xff]
    %v59 = vld [vmem:[%s0 + $0x88] sm:$0xff]
    %v60 = vld [vmem:[%s0 + $0x90] sm:$0xff]
    %v61 = vld [vmem:[%s0 + $0x98] sm:$0xff]
    %v62 = vld [vmem:[%s0 + $0xa0] sm:$0xff]
    %v63 = vld [vmem:[%s0 + $0xa8] sm:$0xff]
    %v64 = vld [vmem:[%s0 + $0xb0] sm:$0xff]
    %v65 = vld [vmem:[%s0 + $0xb8] sm:$0xff]
    %v66 = vld [vmem:[%s0 + $0xc0] sm:$0xff]
    %v67 = vld [vmem:[%s0 + $0xc8] sm:$0xff]
    %v68 = vld [vmem:[%s0 + $0xd0] sm:$0xff]
    %v69 = vld [vmem:[%s0 + $0xd8] sm:$0xff]
    %v70 = vld [vmem:[%s0 + $0xe0] sm:$0xff]
    %v71 = vld [vmem:[%s0 + $0xe8] sm:$0xff]
    %v72 = vld [vmem:[%s0 + $0xf0] sm:$0xff]
    %v73 = vld [vmem:[%s0 + $0xf8] sm:$0xff]
    %75 = vset.pattern.permute.xlu0 0
    %76 = vperm.xlu0 %75, %v42
    %v77 = vpop.permute.xlu0 %76
    %80 = vset.pattern.permute.xlu0 0
    %81 = vperm.xlu0 %80, %v43
    %v82 = vpop.permute.xlu0 %81
    %85 = vset.pattern.permute.xlu0 0
    %86 = vperm.xlu0 %85, %v44
    %v87 = vpop.permute.xlu0 %86
    %90 = vset.pattern.permute.xlu0 0
    %91 = vperm.xlu0 %90, %v45
    %v92 = vpop.permute.xlu0 %91
    %95 = vset.pattern.permute.xlu0 0
    %96 = vperm.xlu0 %95, %v46
    %v97 = vpop.permute.xlu0 %96
    %100 = vset.pattern.permute.xlu0 0
    %101 = vperm.xlu0 %100, %v47
    %v102 = vpop.permute.xlu0 %101
    %105 = vset.pattern.permute.xlu0 0
    %106 = vperm.xlu0 %105, %v48
    %v107 = vpop.permute.xlu0 %106
    %110 = vset.pattern.permute.xlu0 0
    %111 = vperm.xlu0 %110, %v49
    %v112 = vpop.permute.xlu0 %111
    %115 = vset.pattern.permute.xlu0 0
    %116 = vperm.xlu0 %115, %v50
    %v117 = vpop.permute.xlu0 %116
    %120 = vset.pattern.permute.xlu0 0
    %121 = vperm.xlu0 %120, %v51
    %v122 = vpop.permute.xlu0 %121
    %125 = vset.pattern.permute.xlu0 0
    %126 = vperm.xlu0 %125, %v52
    %v127 = vpop.permute.xlu0 %126
    %130 = vset.pattern.permute.xlu0 0
    %131 = vperm.xlu0 %130, %v53
    %v132 = vpop.permute.xlu0 %131
    %135 = vset.pattern.permute.xlu0 0
    %136 = vperm.xlu0 %135, %v54
    %v137 = vpop.permute.xlu0 %136
    %140 = vset.pattern.permute.xlu0 0
    %141 = vperm.xlu0 %140, %v55
    %v142 = vpop.permute.xlu0 %141
    %145 = vset.pattern.permute.xlu0 0
    %146 = vperm.xlu0 %145, %v56
    %v147 = vpop.permute.xlu0 %146
    %150 = vset.pattern.permute.xlu0 0
    %151 = vperm.xlu0 %150, %v57
    %v152 = vpop.permute.xlu0 %151
    %155 = vset.pattern.permute.xlu0 0
    %156 = vperm.xlu0 %155, %v58
    %v157 = vpop.permute.xlu0 %156
    %160 = vset.pattern.permute.xlu0 0
    %161 = vperm.xlu0 %160, %v59
    %v162 = vpop.permute.xlu0 %161
    %165 = vset.pattern.permute.xlu0 0
    %166 = vperm.xlu0 %165, %v60
    %v167 = vpop.permute.xlu0 %166
    %170 = vset.pattern.permute.xlu0 0
    %171 = vperm.xlu0 %170, %v61
    %v172 = vpop.permute.xlu0 %171
    %175 = vset.pattern.permute.xlu0 0
    %176 = vperm.xlu0 %175, %v62
    %v177 = vpop.permute.xlu0 %176
    %180 = vset.pattern.permute.xlu0 0
    %181 = vperm.xlu0 %180, %v63
    %v182 = vpop.permute.xlu0 %181
    %185 = vset.pattern.permute.xlu0 0
    %186 = vperm.xlu0 %185, %v64
    %v187 = vpop.permute.xlu0 %186
    %190 = vset.pattern.permute.xlu0 0
    %191 = vperm.xlu0 %190, %v65
    %v192 = vpop.permute.xlu0 %191
    %195 = vset.pattern.permute.xlu0 0
    %196 = vperm.xlu0 %195, %v66
    %v197 = vpop.permute.xlu0 %196
    %200 = vset.pattern.permute.xlu0 0
    %201 = vperm.xlu0 %200, %v67
    %v202 = vpop.permute.xlu0 %201
    %205 = vset.pattern.permute.xlu0 0
    %206 = vperm.xlu0 %205, %v68
    %v207 = vpop.permute.xlu0 %206
    %210 = vset.pattern.permute.xlu0 0
    %211 = vperm.xlu0 %210, %v69
    %v212 = vpop.permute.xlu0 %211
    %215 = vset.pattern.permute.xlu0 0
    %216 = vperm.xlu0 %215, %v70
    %v217 = vpop.permute.xlu0 %216
    %220 = vset.pattern.permute.xlu0 0
    %221 = vperm.xlu0 %220, %v71
    %v222 = vpop.permute.xlu0 %221
    %225 = vset.pattern.permute.xlu0 0
    %226 = vperm.xlu0 %225, %v72
    %v227 = vpop.permute.xlu0 %226
    %230 = vset.pattern.permute.xlu0 0
    %231 = vperm.xlu0 %230, %v73
    %v232 = vpop.permute.xlu0 %231
    %v235 = vlaneseq
    %v236 = vshrl.u32 %v235, 7
    %v237 = vsub.s32 0, %v236
    %v238 = vrot.slane %v37, %v237
    %v240 = vmul.f32 %v77, %v238
    %v241 = vmul.f32 %v82, %v238
    %v242 = vmul.f32 %v87, %v238
    %v243 = vmul.f32 %v92, %v238
    %v244 = vmul.f32 %v97, %v238
    %v245 = vmul.f32 %v102, %v238
    %v246 = vmul.f32 %v107, %v238
    %v247 = vmul.f32 %v112, %v238
    %v248 = vmul.f32 %v117, %v238
    %v249 = vmul.f32 %v122, %v238
    %v250 = vmul.f32 %v127, %v238
    %v251 = vmul.f32 %v132, %v238
    %v252 = vmul.f32 %v137, %v238
    %v253 = vmul.f32 %v142, %v238
    %v254 = vmul.f32 %v147, %v238
    %v255 = vmul.f32 %v152, %v238
    %v256 = vmul.f32 %v157, %v238
    %v257 = vmul.f32 %v162, %v238
    %v258 = vmul.f32 %v167, %v238
    %v259 = vmul.f32 %v172, %v238
    %v260 = vmul.f32 %v177, %v238
    %v261 = vmul.f32 %v182, %v238
    %v262 = vmul.f32 %v187, %v238
    %v263 = vmul.f32 %v192, %v238
    %v264 = vmul.f32 %v197, %v238
    %v265 = vmul.f32 %v202, %v238
    %v266 = vmul.f32 %v207, %v238
    %v267 = vmul.f32 %v212, %v238
    %v268 = vmul.f32 %v217, %v238
    %v269 = vmul.f32 %v222, %v238
    %v270 = vmul.f32 %v227, %v238
    %v271 = vmul.f32 %v232, %v238
    %v273 = vlaneseq
    %v274 = vshrl.u32 %v273, 7
    %v275 = vsub.s32 0, %v274
    %v276 = vrot.slane %v38, %v275
    %v278 = vadd.f32 %v240, %v276
    %v279 = vadd.f32 %v241, %v276
    %v280 = vadd.f32 %v242, %v276
    %v281 = vadd.f32 %v243, %v276
    %v282 = vadd.f32 %v244, %v276
    %v283 = vadd.f32 %v245, %v276
    %v284 = vadd.f32 %v246, %v276
    %v285 = vadd.f32 %v247, %v276
    %v286 = vadd.f32 %v248, %v276
    %v287 = vadd.f32 %v249, %v276
    %v288 = vadd.f32 %v250, %v276
    %v289 = vadd.f32 %v251, %v276
    %v290 = vadd.f32 %v252, %v276
    %v291 = vadd.f32 %v253, %v276
    %v292 = vadd.f32 %v254, %v276
    %v293 = vadd.f32 %v255, %v276
    %v294 = vadd.f32 %v256, %v276
    %v295 = vadd.f32 %v257, %v276
    %v296 = vadd.f32 %v258, %v276
    %v297 = vadd.f32 %v259, %v276
    %v298 = vadd.f32 %v260, %v276
    %v299 = vadd.f32 %v261, %v276
    %v300 = vadd.f32 %v262, %v276
    %v301 = vadd.f32 %v263, %v276
    %v302 = vadd.f32 %v264, %v276
    %v303 = vadd.f32 %v265, %v276
    %v304 = vadd.f32 %v266, %v276
    %v305 = vadd.f32 %v267, %v276
    %v306 = vadd.f32 %v268, %v276
    %v307 = vadd.f32 %v269, %v276
    %v308 = vadd.f32 %v270, %v276
    %v309 = vadd.f32 %v271, %v276
    %v310 = vtanh.pop %v278
    %v311 = vtanh.pop %v279
    %v312 = vtanh.pop %v280
    %v313 = vtanh.pop %v281
    %v314 = vtanh.pop %v282
    %v315 = vtanh.pop %v283
    %v316 = vtanh.pop %v284
    %v317 = vtanh.pop %v285
    %v318 = vtanh.pop %v286
    %v319 = vtanh.pop %v287
    %v320 = vtanh.pop %v288
    %v321 = vtanh.pop %v289
    %v322 = vtanh.pop %v290
    %v323 = vtanh.pop %v291
    %v324 = vtanh.pop %v292
    %v325 = vtanh.pop %v293
    %v326 = vtanh.pop %v294
    %v327 = vtanh.pop %v295
    %v328 = vtanh.pop %v296
    %v329 = vtanh.pop %v297
    %v330 = vtanh.pop %v298
    %v331 = vtanh.pop %v299
    %v332 = vtanh.pop %v300
    %v333 = vtanh.pop %v301
    %v334 = vtanh.pop %v302
    %v335 = vtanh.pop %v303
    %v336 = vtanh.pop %v304
    %v337 = vtanh.pop %v305
    %v338 = vtanh.pop %v306
    %v339 = vtanh.pop %v307
    %v340 = vtanh.pop %v308
    %v341 = vtanh.pop %v309
    %v342 = vpack.c.bf16 %v311, %v310
    %v343 = vpack.c.bf16 %v313, %v312
    %v344 = vpack.c.bf16 %v315, %v314
    %v345 = vpack.c.bf16 %v317, %v316
    %v346 = vpack.c.bf16 %v319, %v318
    %v347 = vpack.c.bf16 %v321, %v320
    %v348 = vpack.c.bf16 %v323, %v322
    %v349 = vpack.c.bf16 %v325, %v324
    %v350 = vpack.c.bf16 %v327, %v326
    %v351 = vpack.c.bf16 %v329, %v328
    %v352 = vpack.c.bf16 %v331, %v330
    %v353 = vpack.c.bf16 %v333, %v332
    %v354 = vpack.c.bf16 %v335, %v334
    %v355 = vpack.c.bf16 %v337, %v336
    %v356 = vpack.c.bf16 %v339, %v338
    %v357 = vpack.c.bf16 %v341, %v340
    %v358 = vld [vmem:[%s3] sm:$0xf]
    %v359 = vld [vmem:[%s3 + $0x4] sm:$0xf]
    %v360 = vld [vmem:[%s3 + $0x8] sm:$0xf]
    %v361 = vld [vmem:[%s3 + $0xc] sm:$0xf]
    %v362 = vld [vmem:[%s3 + $0x10] sm:$0xf]
    %v363 = vld [vmem:[%s3 + $0x14] sm:$0xf]
    %v364 = vld [vmem:[%s3 + $0x18] sm:$0xf]
    %v365 = vld [vmem:[%s3 + $0x1c] sm:$0xf]
    %v366 = vld [vmem:[%s3 + $0x20] sm:$0xf]
    %v367 = vld [vmem:[%s3 + $0x24] sm:$0xf]
    %v368 = vld [vmem:[%s3 + $0x28] sm:$0xf]
    %v369 = vld [vmem:[%s3 + $0x2c] sm:$0xf]
    %v370 = vld [vmem:[%s3 + $0x30] sm:$0xf]
    %v371 = vld [vmem:[%s3 + $0x34] sm:$0xf]
    %v372 = vld [vmem:[%s3 + $0x38] sm:$0xf]
    %v373 = vld [vmem:[%s3 + $0x3c] sm:$0xf]
    %v375 = vlaneseq
    %v376 = vshrl.u32 %v375, 7
    %v377 = vsub.s32 0, %v376
    %v378 = vrot.slane %v39, %v377
    %v396 = vunpack.c.l.b16 %v358
    %v397 = vunpack.c.l.b16 %v359
    %v398 = vunpack.c.l.b16 %v360
    %v399 = vunpack.c.l.b16 %v361
    %v400 = vunpack.c.l.b16 %v362
    %v401 = vunpack.c.l.b16 %v363
    %v402 = vunpack.c.l.b16 %v364
    %v403 = vunpack.c.l.b16 %v365
    %v404 = vunpack.c.l.b16 %v366
    %v405 = vunpack.c.l.b16 %v367
    %v406 = vunpack.c.l.b16 %v368
    %v407 = vunpack.c.l.b16 %v369
    %v408 = vunpack.c.l.b16 %v370
    %v409 = vunpack.c.l.b16 %v371
    %v410 = vunpack.c.l.b16 %v372
    %v411 = vunpack.c.l.b16 %v373
    %v412 = vpack.c.b16 %v397, %v396
    %v413 = vpack.c.b16 %v399, %v398
    %v414 = vpack.c.b16 %v401, %v400
    %v415 = vpack.c.b16 %v403, %v402
    %v416 = vpack.c.b16 %v405, %v404
    %v417 = vpack.c.b16 %v407, %v406
    %v418 = vpack.c.b16 %v409, %v408
    %v419 = vpack.c.b16 %v411, %v410
    %428 = vmatprep.subr.bf16.mxu0 0
    %429 = vmatpush1.bf16.msra.mxu0 %v419
    %430 = vmatprep.subr.bf16.mxu0 0
    %431 = vmatpush1.bf16.msra.mxu0 %v418
    %432 = vmatprep.subr.bf16.mxu0 0
    %433 = vmatpush1.bf16.msra.mxu0 %v417
    %434 = vmatprep.subr.bf16.mxu0 0
    %435 = vmatpush1.bf16.msra.mxu0 %v416
    %436 = vmatprep.subr.bf16.mxu0 0
    %437 = vmatpush1.bf16.msra.mxu0 %v415
    %438 = vmatprep.subr.bf16.mxu0 0
    %439 = vmatpush1.bf16.msra.mxu0 %v414
    %440 = vmatprep.subr.bf16.mxu0 0
    %441 = vmatpush1.bf16.msra.mxu0 %v413
    %442 = vmatprep.subr.bf16.mxu0 0
    %443 = vmatpush1.bf16.msra.mxu0 %v412
    %444 = vmatprep.subr.bf16.mxu0 0
    %445 = vmatpush2.bf16.msra.mxu0 0
    %446 = vmatprep.subr.bf16.mxu0 0
    %447 = vmatpush2.bf16.msra.mxu0 0
    %448 = vmatprep.subr.bf16.mxu0 0
    %449 = vmatpush2.bf16.msra.mxu0 0
    %450 = vmatprep.subr.bf16.mxu0 0
    %451 = vmatpush2.bf16.msra.mxu0 0
    %452 = vmatprep.subr.bf16.mxu0 0
    %453 = vmatpush2.bf16.msra.mxu0 0
    %454 = vmatprep.subr.bf16.mxu0 0
    %455 = vmatpush2.bf16.msra.mxu0 0
    %456 = vmatprep.subr.bf16.mxu0 0
    %457 = vmatpush2.bf16.msra.mxu0 0
    %458 = vmatprep.subr.bf16.mxu0 0
    %459 = vmatpush2.bf16.msra.mxu0 0
    %460 = vmatprep.mubr.bf16.mxu0 0
    %461 = vmatmul.mubr.bf16.gmra.mxu0 %v342
    %v462 = vpop.f32.mrf.mxu0
    %v463 = vadd.f32 %v378, %v462
    %v464 = vpop.f32.mrf.mxu0
    %v465 = vpop.f32.mrf.mxu0
    %v466 = vadd.f32 %v378, %v465
    %v467 = vpop.f32.mrf.mxu0
    %468 = vmatprep.mubr.bf16.mxu0 0
    %469 = vmatmul.mubr.bf16.gmra.mxu0 %v343
    %v470 = vpop.f32.mrf.mxu0
    %v471 = vadd.f32 %v378, %v470
    %v472 = vpop.f32.mrf.mxu0
    %v473 = vpop.f32.mrf.mxu0
    %v474 = vadd.f32 %v378, %v473
    %v475 = vpop.f32.mrf.mxu0
    %476 = vmatprep.mubr.bf16.mxu0 0
    %477 = vmatmul.mubr.bf16.gmra.mxu0 %v344
    %v478 = vpop.f32.mrf.mxu0
    %v479 = vadd.f32 %v378, %v478
    %v480 = vpop.f32.mrf.mxu0
    %v481 = vpop.f32.mrf.mxu0
    %v482 = vadd.f32 %v378, %v481
    %v483 = vpop.f32.mrf.mxu0
    %484 = vmatprep.mubr.bf16.mxu0 0
    %485 = vmatmul.mubr.bf16.gmra.mxu0 %v345
    %v486 = vpop.f32.mrf.mxu0
    %v487 = vadd.f32 %v378, %v486
    %v488 = vpop.f32.mrf.mxu0
    %v489 = vpop.f32.mrf.mxu0
    %v490 = vadd.f32 %v378, %v489
    %v491 = vpop.f32.mrf.mxu0
    %492 = vmatprep.mubr.bf16.mxu0 0
    %493 = vmatmul.mubr.bf16.gmra.mxu0 %v346
    %v494 = vpop.f32.mrf.mxu0
    %v495 = vadd.f32 %v378, %v494
    %v496 = vpop.f32.mrf.mxu0
    %v497 = vpop.f32.mrf.mxu0
    %v498 = vadd.f32 %v378, %v497
    %v499 = vpop.f32.mrf.mxu0
    %500 = vmatprep.mubr.bf16.mxu0 0
    %501 = vmatmul.mubr.bf16.gmra.mxu0 %v347
    %v502 = vpop.f32.mrf.mxu0
    %v503 = vadd.f32 %v378, %v502
    %v504 = vpop.f32.mrf.mxu0
    %v505 = vpop.f32.mrf.mxu0
    %v506 = vadd.f32 %v378, %v505
    %v507 = vpop.f32.mrf.mxu0
    %508 = vmatprep.mubr.bf16.mxu0 0
    %509 = vmatmul.mubr.bf16.gmra.mxu0 %v348
    %v510 = vpop.f32.mrf.mxu0
    %v511 = vadd.f32 %v378, %v510
    %v512 = vpop.f32.mrf.mxu0
    %v513 = vpop.f32.mrf.mxu0
    %v514 = vadd.f32 %v378, %v513
    %v515 = vpop.f32.mrf.mxu0
    %516 = vmatprep.mubr.bf16.mxu0 0
    %517 = vmatmul.mubr.bf16.gmra.mxu0 %v349
    %v518 = vpop.f32.mrf.mxu0
    %v519 = vadd.f32 %v378, %v518
    %v520 = vpop.f32.mrf.mxu0
    %v521 = vpop.f32.mrf.mxu0
    %v522 = vadd.f32 %v378, %v521
    %v523 = vpop.f32.mrf.mxu0
    %524 = vmatprep.mubr.bf16.mxu0 0
    %525 = vmatmul.mubr.bf16.gmra.mxu0 %v350
    %v526 = vpop.f32.mrf.mxu0
    %v527 = vadd.f32 %v378, %v526
    %v528 = vpop.f32.mrf.mxu0
    %v529 = vpop.f32.mrf.mxu0
    %v530 = vadd.f32 %v378, %v529
    %v531 = vpop.f32.mrf.mxu0
    %532 = vmatprep.mubr.bf16.mxu0 0
    %533 = vmatmul.mubr.bf16.gmra.mxu0 %v351
    %v534 = vpop.f32.mrf.mxu0
    %v535 = vadd.f32 %v378, %v534
    %v536 = vpop.f32.mrf.mxu0
    %v537 = vpop.f32.mrf.mxu0
    %v538 = vadd.f32 %v378, %v537
    %v539 = vpop.f32.mrf.mxu0
    %540 = vmatprep.mubr.bf16.mxu0 0
    %541 = vmatmul.mubr.bf16.gmra.mxu0 %v352
    %v542 = vpop.f32.mrf.mxu0
    %v543 = vadd.f32 %v378, %v542
    %v544 = vpop.f32.mrf.mxu0
    %v545 = vpop.f32.mrf.mxu0
    %v546 = vadd.f32 %v378, %v545
    %v547 = vpop.f32.mrf.mxu0
    %548 = vmatprep.mubr.bf16.mxu0 0
    %549 = vmatmul.mubr.bf16.gmra.mxu0 %v353
    %v550 = vpop.f32.mrf.mxu0
    %v551 = vadd.f32 %v378, %v550
    %v552 = vpop.f32.mrf.mxu0
    %v553 = vpop.f32.mrf.mxu0
    %v554 = vadd.f32 %v378, %v553
    %v555 = vpop.f32.mrf.mxu0
    %556 = vmatprep.mubr.bf16.mxu0 0
    %557 = vmatmul.mubr.bf16.gmra.mxu0 %v354
    %v558 = vpop.f32.mrf.mxu0
    %v559 = vadd.f32 %v378, %v558
    %v560 = vpop.f32.mrf.mxu0
    %v561 = vpop.f32.mrf.mxu0
    %v562 = vadd.f32 %v378, %v561
    %v563 = vpop.f32.mrf.mxu0
    %564 = vmatprep.mubr.bf16.mxu0 0
    %565 = vmatmul.mubr.bf16.gmra.mxu0 %v355
    %v566 = vpop.f32.mrf.mxu0
    %v567 = vadd.f32 %v378, %v566
    %v568 = vpop.f32.mrf.mxu0
    %v569 = vpop.f32.mrf.mxu0
    %v570 = vadd.f32 %v378, %v569
    %v571 = vpop.f32.mrf.mxu0
    %572 = vmatprep.mubr.bf16.mxu0 0
    %573 = vmatmul.mubr.bf16.gmra.mxu0 %v356
    %v574 = vpop.f32.mrf.mxu0
    %v575 = vadd.f32 %v378, %v574
    %v576 = vpop.f32.mrf.mxu0
    %v577 = vpop.f32.mrf.mxu0
    %v578 = vadd.f32 %v378, %v577
    %v579 = vpop.f32.mrf.mxu0
    %580 = vmatprep.mubr.bf16.mxu0 0
    %581 = vmatmul.mubr.bf16.gmra.mxu0 %v357
    %v582 = vpop.f32.mrf.mxu0
    %v583 = vadd.f32 %v378, %v582
    %v584 = vpop.f32.mrf.mxu0
    %v585 = vpop.f32.mrf.mxu0
    %v586 = vadd.f32 %v378, %v585
    %v587 = vpop.f32.mrf.mxu0
    %588 = vdwg.mxu0
    %v589 = vtanh.pop %v463
    %v590 = vtanh.pop %v466
    %v591 = vtanh.pop %v471
    %v592 = vtanh.pop %v474
    %v593 = vtanh.pop %v479
    %v594 = vtanh.pop %v482
    %v595 = vtanh.pop %v487
    %v596 = vtanh.pop %v490
    %v597 = vtanh.pop %v495
    %v598 = vtanh.pop %v498
    %v599 = vtanh.pop %v503
    %v600 = vtanh.pop %v506
    %v601 = vtanh.pop %v511
    %v602 = vtanh.pop %v514
    %v603 = vtanh.pop %v519
    %v604 = vtanh.pop %v522
    %v605 = vtanh.pop %v527
    %v606 = vtanh.pop %v530
    %v607 = vtanh.pop %v535
    %v608 = vtanh.pop %v538
    %v609 = vtanh.pop %v543
    %v610 = vtanh.pop %v546
    %v611 = vtanh.pop %v551
    %v612 = vtanh.pop %v554
    %v613 = vtanh.pop %v559
    %v614 = vtanh.pop %v562
    %v615 = vtanh.pop %v567
    %v616 = vtanh.pop %v570
    %v617 = vtanh.pop %v575
    %v618 = vtanh.pop %v578
    %v619 = vtanh.pop %v583
    %v620 = vtanh.pop %v586
    %v621 = vpack.c.bf16 %v590, %v589
    %v622 = vpack.c.bf16 %v592, %v591
    %v623 = vpack.c.bf16 %v594, %v593
    %v624 = vpack.c.bf16 %v596, %v595
    %v625 = vpack.c.bf16 %v598, %v597
    %v626 = vpack.c.bf16 %v600, %v599
    %v627 = vpack.c.bf16 %v602, %v601
    %v628 = vpack.c.bf16 %v604, %v603
    %v629 = vpack.c.bf16 %v606, %v605
    %v630 = vpack.c.bf16 %v608, %v607
    %v631 = vpack.c.bf16 %v610, %v609
    %v632 = vpack.c.bf16 %v612, %v611
    %v633 = vpack.c.bf16 %v614, %v613
    %v634 = vpack.c.bf16 %v616, %v615
    %v635 = vpack.c.bf16 %v618, %v617
    %v636 = vpack.c.bf16 %v620, %v619
    %v637 = vld [vmem:[%s5] sm:$0xf]
    %v638 = vld [vmem:[%s5 + $0x4] sm:$0xf]
    %v639 = vld [vmem:[%s5 + $0x8] sm:$0xf]
    %v640 = vld [vmem:[%s5 + $0xc] sm:$0xf]
    %v641 = vld [vmem:[%s5 + $0x10] sm:$0xf]
    %v642 = vld [vmem:[%s5 + $0x14] sm:$0xf]
    %v643 = vld [vmem:[%s5 + $0x18] sm:$0xf]
    %v644 = vld [vmem:[%s5 + $0x1c] sm:$0xf]
    %v645 = vld [vmem:[%s5 + $0x20] sm:$0xf]
    %v646 = vld [vmem:[%s5 + $0x24] sm:$0xf]
    %v647 = vld [vmem:[%s5 + $0x28] sm:$0xf]
    %v648 = vld [vmem:[%s5 + $0x2c] sm:$0xf]
    %v649 = vld [vmem:[%s5 + $0x30] sm:$0xf]
    %v650 = vld [vmem:[%s5 + $0x34] sm:$0xf]
    %v651 = vld [vmem:[%s5 + $0x38] sm:$0xf]
    %v652 = vld [vmem:[%s5 + $0x3c] sm:$0xf]
    %v654 = vlaneseq
    %v655 = vshrl.u32 %v654, 7
    %v656 = vsub.s32 0, %v655
    %v657 = vrot.slane %v40, %v656
    %v675 = vunpack.c.l.b16 %v637
    %v676 = vunpack.c.l.b16 %v638
    %v677 = vunpack.c.l.b16 %v639
    %v678 = vunpack.c.l.b16 %v640
    %v679 = vunpack.c.l.b16 %v641
    %v680 = vunpack.c.l.b16 %v642
    %v681 = vunpack.c.l.b16 %v643
    %v682 = vunpack.c.l.b16 %v644
    %v683 = vunpack.c.l.b16 %v645
    %v684 = vunpack.c.l.b16 %v646
    %v685 = vunpack.c.l.b16 %v647
    %v686 = vunpack.c.l.b16 %v648
    %v687 = vunpack.c.l.b16 %v649
    %v688 = vunpack.c.l.b16 %v650
    %v689 = vunpack.c.l.b16 %v651
    %v690 = vunpack.c.l.b16 %v652
    %v691 = vpack.c.b16 %v676, %v675
    %v692 = vpack.c.b16 %v678, %v677
    %v693 = vpack.c.b16 %v680, %v679
    %v694 = vpack.c.b16 %v682, %v681
    %v695 = vpack.c.b16 %v684, %v683
    %v696 = vpack.c.b16 %v686, %v685
    %v697 = vpack.c.b16 %v688, %v687
    %v698 = vpack.c.b16 %v690, %v689
    %707 = vmatprep.subr.bf16.mxu0 0
    %708 = vmatpush1.bf16.msra.mxu0 %v698
    %709 = vmatprep.subr.bf16.mxu0 0
    %710 = vmatpush1.bf16.msra.mxu0 %v697
    %711 = vmatprep.subr.bf16.mxu0 0
    %712 = vmatpush1.bf16.msra.mxu0 %v696
    %713 = vmatprep.subr.bf16.mxu0 0
    %714 = vmatpush1.bf16.msra.mxu0 %v695
    %715 = vmatprep.subr.bf16.mxu0 0
    %716 = vmatpush1.bf16.msra.mxu0 %v694
    %717 = vmatprep.subr.bf16.mxu0 0
    %718 = vmatpush1.bf16.msra.mxu0 %v693
    %719 = vmatprep.subr.bf16.mxu0 0
    %720 = vmatpush1.bf16.msra.mxu0 %v692
    %721 = vmatprep.subr.bf16.mxu0 0
    %722 = vmatpush1.bf16.msra.mxu0 %v691
    %723 = vmatprep.subr.bf16.mxu0 0
    %724 = vmatpush2.bf16.msra.mxu0 0
    %725 = vmatprep.subr.bf16.mxu0 0
    %726 = vmatpush2.bf16.msra.mxu0 0
    %727 = vmatprep.subr.bf16.mxu0 0
    %728 = vmatpush2.bf16.msra.mxu0 0
    %729 = vmatprep.subr.bf16.mxu0 0
    %730 = vmatpush2.bf16.msra.mxu0 0
    %731 = vmatprep.subr.bf16.mxu0 0
    %732 = vmatpush2.bf16.msra.mxu0 0
    %733 = vmatprep.subr.bf16.mxu0 0
    %734 = vmatpush2.bf16.msra.mxu0 0
    %735 = vmatprep.subr.bf16.mxu0 0
    %736 = vmatpush2.bf16.msra.mxu0 0
    %737 = vmatprep.subr.bf16.mxu0 0
    %738 = vmatpush2.bf16.msra.mxu0 0
    %739 = vmatprep.mubr.bf16.mxu0 0
    %740 = vmatmul.mubr.bf16.gmra.mxu0 %v621
    %v741 = vpop.f32.mrf.mxu0
    %v742 = vadd.f32 %v657, %v741
    %v743 = vpop.f32.mrf.mxu0
    %v744 = vpop.f32.mrf.mxu0
    %v745 = vadd.f32 %v657, %v744
    %v746 = vpop.f32.mrf.mxu0
    %747 = vmatprep.mubr.bf16.mxu0 0
    %748 = vmatmul.mubr.bf16.gmra.mxu0 %v622
    %v749 = vpop.f32.mrf.mxu0
    %v750 = vadd.f32 %v657, %v749
    %v751 = vpop.f32.mrf.mxu0
    %v752 = vpop.f32.mrf.mxu0
    %v753 = vadd.f32 %v657, %v752
    %v754 = vpop.f32.mrf.mxu0
    %755 = vmatprep.mubr.bf16.mxu0 0
    %756 = vmatmul.mubr.bf16.gmra.mxu0 %v623
    %v757 = vpop.f32.mrf.mxu0
    %v758 = vadd.f32 %v657, %v757
    %v759 = vpop.f32.mrf.mxu0
    %v760 = vpop.f32.mrf.mxu0
    %v761 = vadd.f32 %v657, %v760
    %v762 = vpop.f32.mrf.mxu0
    %763 = vmatprep.mubr.bf16.mxu0 0
    %764 = vmatmul.mubr.bf16.gmra.mxu0 %v624
    %v765 = vpop.f32.mrf.mxu0
    %v766 = vadd.f32 %v657, %v765
    %v767 = vpop.f32.mrf.mxu0
    %v768 = vpop.f32.mrf.mxu0
    %v769 = vadd.f32 %v657, %v768
    %v770 = vpop.f32.mrf.mxu0
    %771 = vmatprep.mubr.bf16.mxu0 0
    %772 = vmatmul.mubr.bf16.gmra.mxu0 %v625
    %v773 = vpop.f32.mrf.mxu0
    %v774 = vadd.f32 %v657, %v773
    %v775 = vpop.f32.mrf.mxu0
    %v776 = vpop.f32.mrf.mxu0
    %v777 = vadd.f32 %v657, %v776
    %v778 = vpop.f32.mrf.mxu0
    %779 = vmatprep.mubr.bf16.mxu0 0
    %780 = vmatmul.mubr.bf16.gmra.mxu0 %v626
    %v781 = vpop.f32.mrf.mxu0
    %v782 = vadd.f32 %v657, %v781
    %v783 = vpop.f32.mrf.mxu0
    %v784 = vpop.f32.mrf.mxu0
    %v785 = vadd.f32 %v657, %v784
    %v786 = vpop.f32.mrf.mxu0
    %787 = vmatprep.mubr.bf16.mxu0 0
    %788 = vmatmul.mubr.bf16.gmra.mxu0 %v627
    %v789 = vpop.f32.mrf.mxu0
    %v790 = vadd.f32 %v657, %v789
    %v791 = vpop.f32.mrf.mxu0
    %v792 = vpop.f32.mrf.mxu0
    %v793 = vadd.f32 %v657, %v792
    %v794 = vpop.f32.mrf.mxu0
    %795 = vmatprep.mubr.bf16.mxu0 0
    %796 = vmatmul.mubr.bf16.gmra.mxu0 %v628
    %v797 = vpop.f32.mrf.mxu0
    %v798 = vadd.f32 %v657, %v797
    %v799 = vpop.f32.mrf.mxu0
    %v800 = vpop.f32.mrf.mxu0
    %v801 = vadd.f32 %v657, %v800
    %v802 = vpop.f32.mrf.mxu0
    %803 = vmatprep.mubr.bf16.mxu0 0
    %804 = vmatmul.mubr.bf16.gmra.mxu0 %v629
    %v805 = vpop.f32.mrf.mxu0
    %v806 = vadd.f32 %v657, %v805
    %v807 = vpop.f32.mrf.mxu0
    %v808 = vpop.f32.mrf.mxu0
    %v809 = vadd.f32 %v657, %v808
    %v810 = vpop.f32.mrf.mxu0
    %811 = vmatprep.mubr.bf16.mxu0 0
    %812 = vmatmul.mubr.bf16.gmra.mxu0 %v630
    %v813 = vpop.f32.mrf.mxu0
    %v814 = vadd.f32 %v657, %v813
    %v815 = vpop.f32.mrf.mxu0
    %v816 = vpop.f32.mrf.mxu0
    %v817 = vadd.f32 %v657, %v816
    %v818 = vpop.f32.mrf.mxu0
    %819 = vmatprep.mubr.bf16.mxu0 0
    %820 = vmatmul.mubr.bf16.gmra.mxu0 %v631
    %v821 = vpop.f32.mrf.mxu0
    %v822 = vadd.f32 %v657, %v821
    %v823 = vpop.f32.mrf.mxu0
    %v824 = vpop.f32.mrf.mxu0
    %v825 = vadd.f32 %v657, %v824
    %v826 = vpop.f32.mrf.mxu0
    %827 = vmatprep.mubr.bf16.mxu0 0
    %828 = vmatmul.mubr.bf16.gmra.mxu0 %v632
    %v829 = vpop.f32.mrf.mxu0
    %v830 = vadd.f32 %v657, %v829
    %v831 = vpop.f32.mrf.mxu0
    %v832 = vpop.f32.mrf.mxu0
    %v833 = vadd.f32 %v657, %v832
    %v834 = vpop.f32.mrf.mxu0
    %835 = vmatprep.mubr.bf16.mxu0 0
    %836 = vmatmul.mubr.bf16.gmra.mxu0 %v633
    %v837 = vpop.f32.mrf.mxu0
    %v838 = vadd.f32 %v657, %v837
    %v839 = vpop.f32.mrf.mxu0
    %v840 = vpop.f32.mrf.mxu0
    %v841 = vadd.f32 %v657, %v840
    %v842 = vpop.f32.mrf.mxu0
    %843 = vmatprep.mubr.bf16.mxu0 0
    %844 = vmatmul.mubr.bf16.gmra.mxu0 %v634
    %v845 = vpop.f32.mrf.mxu0
    %v846 = vadd.f32 %v657, %v845
    %v847 = vpop.f32.mrf.mxu0
    %v848 = vpop.f32.mrf.mxu0
    %v849 = vadd.f32 %v657, %v848
    %v850 = vpop.f32.mrf.mxu0
    %851 = vmatprep.mubr.bf16.mxu0 0
    %852 = vmatmul.mubr.bf16.gmra.mxu0 %v635
    %v853 = vpop.f32.mrf.mxu0
    %v854 = vadd.f32 %v657, %v853
    %v855 = vpop.f32.mrf.mxu0
    %v856 = vpop.f32.mrf.mxu0
    %v857 = vadd.f32 %v657, %v856
    %v858 = vpop.f32.mrf.mxu0
    %859 = vmatprep.mubr.bf16.mxu0 0
    %860 = vmatmul.mubr.bf16.gmra.mxu0 %v636
    %v861 = vpop.f32.mrf.mxu0
    %v862 = vadd.f32 %v657, %v861
    %v863 = vpop.f32.mrf.mxu0
    %v864 = vpop.f32.mrf.mxu0
    %v865 = vadd.f32 %v657, %v864
    %v866 = vpop.f32.mrf.mxu0
    %867 = vdwg.mxu0
    %v868 = vtanh.pop %v742
    %v869 = vtanh.pop %v745
    %v870 = vtanh.pop %v750
    %v871 = vtanh.pop %v753
    %v872 = vtanh.pop %v758
    %v873 = vtanh.pop %v761
    %v874 = vtanh.pop %v766
    %v875 = vtanh.pop %v769
    %v876 = vtanh.pop %v774
    %v877 = vtanh.pop %v777
    %v878 = vtanh.pop %v782
    %v879 = vtanh.pop %v785
    %v880 = vtanh.pop %v790
    %v881 = vtanh.pop %v793
    %v882 = vtanh.pop %v798
    %v883 = vtanh.pop %v801
    %v884 = vtanh.pop %v806
    %v885 = vtanh.pop %v809
    %v886 = vtanh.pop %v814
    %v887 = vtanh.pop %v817
    %v888 = vtanh.pop %v822
    %v889 = vtanh.pop %v825
    %v890 = vtanh.pop %v830
    %v891 = vtanh.pop %v833
    %v892 = vtanh.pop %v838
    %v893 = vtanh.pop %v841
    %v894 = vtanh.pop %v846
    %v895 = vtanh.pop %v849
    %v896 = vtanh.pop %v854
    %v897 = vtanh.pop %v857
    %v898 = vtanh.pop %v862
    %v899 = vtanh.pop %v865
    %v900 = vpack.c.bf16 %v869, %v868
    %v901 = vpack.c.bf16 %v871, %v870
    %v902 = vpack.c.bf16 %v873, %v872
    %v903 = vpack.c.bf16 %v875, %v874
    %v904 = vpack.c.bf16 %v877, %v876
    %v905 = vpack.c.bf16 %v879, %v878
    %v906 = vpack.c.bf16 %v881, %v880
    %v907 = vpack.c.bf16 %v883, %v882
    %v908 = vpack.c.bf16 %v885, %v884
    %v909 = vpack.c.bf16 %v887, %v886
    %v910 = vpack.c.bf16 %v889, %v888
    %v911 = vpack.c.bf16 %v891, %v890
    %v912 = vpack.c.bf16 %v893, %v892
    %v913 = vpack.c.bf16 %v895, %v894
    %v914 = vpack.c.bf16 %v897, %v896
    %v915 = vpack.c.bf16 %v899, %v898
    %v916 = vld [vmem:[%s7] sm:$0xf]
    %v917 = vld [vmem:[%s7 + $0x4] sm:$0xf]
    %v918 = vld [vmem:[%s7 + $0x8] sm:$0xf]
    %v919 = vld [vmem:[%s7 + $0xc] sm:$0xf]
    %v920 = vld [vmem:[%s7 + $0x10] sm:$0xf]
    %v921 = vld [vmem:[%s7 + $0x14] sm:$0xf]
    %v922 = vld [vmem:[%s7 + $0x18] sm:$0xf]
    %v923 = vld [vmem:[%s7 + $0x1c] sm:$0xf]
    %v924 = vld [vmem:[%s7 + $0x20] sm:$0xf]
    %v925 = vld [vmem:[%s7 + $0x24] sm:$0xf]
    %v926 = vld [vmem:[%s7 + $0x28] sm:$0xf]
    %v927 = vld [vmem:[%s7 + $0x2c] sm:$0xf]
    %v928 = vld [vmem:[%s7 + $0x30] sm:$0xf]
    %v929 = vld [vmem:[%s7 + $0x34] sm:$0xf]
    %v930 = vld [vmem:[%s7 + $0x38] sm:$0xf]
    %v931 = vld [vmem:[%s7 + $0x3c] sm:$0xf]
    %v933 = vlaneseq
    %v934 = vshrl.u32 %v933, 7
    %v935 = vsub.s32 0, %v934
    %v936 = vrot.slane %v41, %v935
    %v954 = vunpack.c.l.b16 %v916
    %v955 = vunpack.c.l.b16 %v917
    %v956 = vunpack.c.l.b16 %v918
    %v957 = vunpack.c.l.b16 %v919
    %v958 = vunpack.c.l.b16 %v920
    %v959 = vunpack.c.l.b16 %v921
    %v960 = vunpack.c.l.b16 %v922
    %v961 = vunpack.c.l.b16 %v923
    %v962 = vunpack.c.l.b16 %v924
    %v963 = vunpack.c.l.b16 %v925
    %v964 = vunpack.c.l.b16 %v926
    %v965 = vunpack.c.l.b16 %v927
    %v966 = vunpack.c.l.b16 %v928
    %v967 = vunpack.c.l.b16 %v929
    %v968 = vunpack.c.l.b16 %v930
    %v969 = vunpack.c.l.b16 %v931
    %v970 = vpack.c.b16 %v955, %v954
    %v971 = vpack.c.b16 %v957, %v956
    %v972 = vpack.c.b16 %v959, %v958
    %v973 = vpack.c.b16 %v961, %v960
    %v974 = vpack.c.b16 %v963, %v962
    %v975 = vpack.c.b16 %v965, %v964
    %v976 = vpack.c.b16 %v967, %v966
    %v977 = vpack.c.b16 %v969, %v968
    %986 = vmatprep.subr.bf16.mxu0 0
    %987 = vmatpush1.bf16.msra.mxu0 %v977
    %988 = vmatprep.subr.bf16.mxu0 0
    %989 = vmatpush1.bf16.msra.mxu0 %v976
    %990 = vmatprep.subr.bf16.mxu0 0
    %991 = vmatpush1.bf16.msra.mxu0 %v975
    %992 = vmatprep.subr.bf16.mxu0 0
    %993 = vmatpush1.bf16.msra.mxu0 %v974
    %994 = vmatprep.subr.bf16.mxu0 0
    %995 = vmatpush1.bf16.msra.mxu0 %v973
    %996 = vmatprep.subr.bf16.mxu0 0
    %997 = vmatpush1.bf16.msra.mxu0 %v972
    %998 = vmatprep.subr.bf16.mxu0 0
    %999 = vmatpush1.bf16.msra.mxu0 %v971
    %1000 = vmatprep.subr.bf16.mxu0 0
    %1001 = vmatpush1.bf16.msra.mxu0 %v970
    %1002 = vmatprep.subr.bf16.mxu0 0
    %1003 = vmatpush2.bf16.msra.mxu0 0
    %1004 = vmatprep.subr.bf16.mxu0 0
    %1005 = vmatpush2.bf16.msra.mxu0 0
    %1006 = vmatprep.subr.bf16.mxu0 0
    %1007 = vmatpush2.bf16.msra.mxu0 0
    %1008 = vmatprep.subr.bf16.mxu0 0
    %1009 = vmatpush2.bf16.msra.mxu0 0
    %1010 = vmatprep.subr.bf16.mxu0 0
    %1011 = vmatpush2.bf16.msra.mxu0 0
    %1012 = vmatprep.subr.bf16.mxu0 0
    %1013 = vmatpush2.bf16.msra.mxu0 0
    %1014 = vmatprep.subr.bf16.mxu0 0
    %1015 = vmatpush2.bf16.msra.mxu0 0
    %1016 = vmatprep.subr.bf16.mxu0 0
    %1017 = vmatpush2.bf16.msra.mxu0 0
    %1018 = vmatprep.mubr.bf16.mxu0 0
    %1019 = vmatmul.mubr.bf16.gmra.mxu0 %v900
    %v1020 = vpop.f32.mrf.mxu0
    %v1021 = vadd.f32 %v936, %v1020
    %v1022 = vpop.f32.mrf.mxu0
    %v1023 = vpop.f32.mrf.mxu0
    %v1024 = vadd.f32 %v936, %v1023
    %v1025 = vpop.f32.mrf.mxu0
    %1026 = vmatprep.mubr.bf16.mxu0 0
    %1027 = vmatmul.mubr.bf16.gmra.mxu0 %v901
    %v1028 = vpop.f32.mrf.mxu0
    %v1029 = vadd.f32 %v936, %v1028
    %v1030 = vpop.f32.mrf.mxu0
    %v1031 = vpop.f32.mrf.mxu0
    %v1032 = vadd.f32 %v936, %v1031
    %v1033 = vpop.f32.mrf.mxu0
    %1034 = vmatprep.mubr.bf16.mxu0 0
    %1035 = vmatmul.mubr.bf16.gmra.mxu0 %v902
    %v1036 = vpop.f32.mrf.mxu0
    %v1037 = vadd.f32 %v936, %v1036
    %v1038 = vpop.f32.mrf.mxu0
    %v1039 = vpop.f32.mrf.mxu0
    %v1040 = vadd.f32 %v936, %v1039
    %v1041 = vpop.f32.mrf.mxu0
    %1042 = vmatprep.mubr.bf16.mxu0 0
    %1043 = vmatmul.mubr.bf16.gmra.mxu0 %v903
    %v1044 = vpop.f32.mrf.mxu0
    %v1045 = vadd.f32 %v936, %v1044
    %v1046 = vpop.f32.mrf.mxu0
    %v1047 = vpop.f32.mrf.mxu0
    %v1048 = vadd.f32 %v936, %v1047
    %v1049 = vpop.f32.mrf.mxu0
    %1050 = vmatprep.mubr.bf16.mxu0 0
    %1051 = vmatmul.mubr.bf16.gmra.mxu0 %v904
    %v1052 = vpop.f32.mrf.mxu0
    %v1053 = vadd.f32 %v936, %v1052
    %v1054 = vpop.f32.mrf.mxu0
    %v1055 = vpop.f32.mrf.mxu0
    %v1056 = vadd.f32 %v936, %v1055
    %v1057 = vpop.f32.mrf.mxu0
    %1058 = vmatprep.mubr.bf16.mxu0 0
    %1059 = vmatmul.mubr.bf16.gmra.mxu0 %v905
    %v1060 = vpop.f32.mrf.mxu0
    %v1061 = vadd.f32 %v936, %v1060
    %v1062 = vpop.f32.mrf.mxu0
    %v1063 = vpop.f32.mrf.mxu0
    %v1064 = vadd.f32 %v936, %v1063
    %v1065 = vpop.f32.mrf.mxu0
    %1066 = vmatprep.mubr.bf16.mxu0 0
    %1067 = vmatmul.mubr.bf16.gmra.mxu0 %v906
    %v1068 = vpop.f32.mrf.mxu0
    %v1069 = vadd.f32 %v936, %v1068
    %v1070 = vpop.f32.mrf.mxu0
    %v1071 = vpop.f32.mrf.mxu0
    %v1072 = vadd.f32 %v936, %v1071
    %v1073 = vpop.f32.mrf.mxu0
    %1074 = vmatprep.mubr.bf16.mxu0 0
    %1075 = vmatmul.mubr.bf16.gmra.mxu0 %v907
    %v1076 = vpop.f32.mrf.mxu0
    %v1077 = vadd.f32 %v936, %v1076
    %v1078 = vpop.f32.mrf.mxu0
    %v1079 = vpop.f32.mrf.mxu0
    %v1080 = vadd.f32 %v936, %v1079
    %v1081 = vpop.f32.mrf.mxu0
    %1082 = vmatprep.mubr.bf16.mxu0 0
    %1083 = vmatmul.mubr.bf16.gmra.mxu0 %v908
    %v1084 = vpop.f32.mrf.mxu0
    %v1085 = vadd.f32 %v936, %v1084
    %v1086 = vpop.f32.mrf.mxu0
    %v1087 = vpop.f32.mrf.mxu0
    %v1088 = vadd.f32 %v936, %v1087
    %v1089 = vpop.f32.mrf.mxu0
    %1090 = vmatprep.mubr.bf16.mxu0 0
    %1091 = vmatmul.mubr.bf16.gmra.mxu0 %v909
    %v1092 = vpop.f32.mrf.mxu0
    %v1093 = vadd.f32 %v936, %v1092
    %v1094 = vpop.f32.mrf.mxu0
    %v1095 = vpop.f32.mrf.mxu0
    %v1096 = vadd.f32 %v936, %v1095
    %v1097 = vpop.f32.mrf.mxu0
    %1098 = vmatprep.mubr.bf16.mxu0 0
    %1099 = vmatmul.mubr.bf16.gmra.mxu0 %v910
    %v1100 = vpop.f32.mrf.mxu0
    %v1101 = vadd.f32 %v936, %v1100
    %v1102 = vpop.f32.mrf.mxu0
    %v1103 = vpop.f32.mrf.mxu0
    %v1104 = vadd.f32 %v936, %v1103
    %v1105 = vpop.f32.mrf.mxu0
    %1106 = vmatprep.mubr.bf16.mxu0 0
    %1107 = vmatmul.mubr.bf16.gmra.mxu0 %v911
    %v1108 = vpop.f32.mrf.mxu0
    %v1109 = vadd.f32 %v936, %v1108
    %v1110 = vpop.f32.mrf.mxu0
    %v1111 = vpop.f32.mrf.mxu0
    %v1112 = vadd.f32 %v936, %v1111
    %v1113 = vpop.f32.mrf.mxu0
    %1114 = vmatprep.mubr.bf16.mxu0 0
    %1115 = vmatmul.mubr.bf16.gmra.mxu0 %v912
    %v1116 = vpop.f32.mrf.mxu0
    %v1117 = vadd.f32 %v936, %v1116
    %v1118 = vpop.f32.mrf.mxu0
    %v1119 = vpop.f32.mrf.mxu0
    %v1120 = vadd.f32 %v936, %v1119
    %v1121 = vpop.f32.mrf.mxu0
    %1122 = vmatprep.mubr.bf16.mxu0 0
    %1123 = vmatmul.mubr.bf16.gmra.mxu0 %v913
    %v1124 = vpop.f32.mrf.mxu0
    %v1125 = vadd.f32 %v936, %v1124
    %v1126 = vpop.f32.mrf.mxu0
    %v1127 = vpop.f32.mrf.mxu0
    %v1128 = vadd.f32 %v936, %v1127
    %v1129 = vpop.f32.mrf.mxu0
    %1130 = vmatprep.mubr.bf16.mxu0 0
    %1131 = vmatmul.mubr.bf16.gmra.mxu0 %v914
    %v1132 = vpop.f32.mrf.mxu0
    %v1133 = vadd.f32 %v936, %v1132
    %v1134 = vpop.f32.mrf.mxu0
    %v1135 = vpop.f32.mrf.mxu0
    %v1136 = vadd.f32 %v936, %v1135
    %v1137 = vpop.f32.mrf.mxu0
    %1138 = vmatprep.mubr.bf16.mxu0 0
    %1139 = vmatmul.mubr.bf16.gmra.mxu0 %v915
    %v1140 = vpop.f32.mrf.mxu0
    %v1141 = vadd.f32 %v936, %v1140
    %v1142 = vpop.f32.mrf.mxu0
    %v1143 = vpop.f32.mrf.mxu0
    %v1144 = vadd.f32 %v936, %v1143
    %v1145 = vpop.f32.mrf.mxu0
    %1146 = vdwg.mxu0
    %v1147 = vtanh.pop %v1021
    %v1148 = vtanh.pop %v1024
    %v1149 = vtanh.pop %v1029
    %v1150 = vtanh.pop %v1032
    %v1151 = vtanh.pop %v1037
    %v1152 = vtanh.pop %v1040
    %v1153 = vtanh.pop %v1045
    %v1154 = vtanh.pop %v1048
    %v1155 = vtanh.pop %v1053
    %v1156 = vtanh.pop %v1056
    %v1157 = vtanh.pop %v1061
    %v1158 = vtanh.pop %v1064
    %v1159 = vtanh.pop %v1069
    %v1160 = vtanh.pop %v1072
    %v1161 = vtanh.pop %v1077
    %v1162 = vtanh.pop %v1080
    %v1163 = vtanh.pop %v1085
    %v1164 = vtanh.pop %v1088
    %v1165 = vtanh.pop %v1093
    %v1166 = vtanh.pop %v1096
    %v1167 = vtanh.pop %v1101
    %v1168 = vtanh.pop %v1104
    %v1169 = vtanh.pop %v1109
    %v1170 = vtanh.pop %v1112
    %v1171 = vtanh.pop %v1117
    %v1172 = vtanh.pop %v1120
    %v1173 = vtanh.pop %v1125
    %v1174 = vtanh.pop %v1128
    %v1175 = vtanh.pop %v1133
    %v1176 = vtanh.pop %v1136
    %v1177 = vtanh.pop %v1141
    %v1178 = vtanh.pop %v1144
    %v1179 = vpack.c.bf16 %v1148, %v1147
    %v1180 = vpack.c.bf16 %v1150, %v1149
    %v1181 = vpack.c.bf16 %v1152, %v1151
    %v1182 = vpack.c.bf16 %v1154, %v1153
    %v1183 = vpack.c.bf16 %v1156, %v1155
    %v1184 = vpack.c.bf16 %v1158, %v1157
    %v1185 = vpack.c.bf16 %v1160, %v1159
    %v1186 = vpack.c.bf16 %v1162, %v1161
    %v1187 = vpack.c.bf16 %v1164, %v1163
    %v1188 = vpack.c.bf16 %v1166, %v1165
    %v1189 = vpack.c.bf16 %v1168, %v1167
    %v1190 = vpack.c.bf16 %v1170, %v1169
    %v1191 = vpack.c.bf16 %v1172, %v1171
    %v1192 = vpack.c.bf16 %v1174, %v1173
    %v1193 = vpack.c.bf16 %v1176, %v1175
    %v1194 = vpack.c.bf16 %v1178, %v1177
    %v1195 = vld [vmem:[%s9] sm:$0xf]
    %v1196 = vld [vmem:[%s9 + $0x4] sm:$0xf]
    %v1197 = vld [vmem:[%s9 + $0x8] sm:$0xf]
    %v1198 = vld [vmem:[%s9 + $0xc] sm:$0xf]
    %v1199 = vld [vmem:[%s9 + $0x10] sm:$0xf]
    %v1200 = vld [vmem:[%s9 + $0x14] sm:$0xf]
    %v1201 = vld [vmem:[%s9 + $0x18] sm:$0xf]
    %v1202 = vld [vmem:[%s9 + $0x1c] sm:$0xf]
    %v1203 = vld [vmem:[%s9 + $0x20] sm:$0xf]
    %v1204 = vld [vmem:[%s9 + $0x24] sm:$0xf]
    %v1205 = vld [vmem:[%s9 + $0x28] sm:$0xf]
    %v1206 = vld [vmem:[%s9 + $0x2c] sm:$0xf]
    %v1207 = vld [vmem:[%s9 + $0x30] sm:$0xf]
    %v1208 = vld [vmem:[%s9 + $0x34] sm:$0xf]
    %v1209 = vld [vmem:[%s9 + $0x38] sm:$0xf]
    %v1210 = vld [vmem:[%s9 + $0x3c] sm:$0xf]
    %v1227 = vunpack.c.l.b16 %v1195
    %v1228 = vunpack.c.l.b16 %v1196
    %v1229 = vunpack.c.l.b16 %v1197
    %v1230 = vunpack.c.l.b16 %v1198
    %v1231 = vunpack.c.l.b16 %v1199
    %v1232 = vunpack.c.l.b16 %v1200
    %v1233 = vunpack.c.l.b16 %v1201
    %v1234 = vunpack.c.l.b16 %v1202
    %v1235 = vunpack.c.l.b16 %v1203
    %v1236 = vunpack.c.l.b16 %v1204
    %v1237 = vunpack.c.l.b16 %v1205
    %v1238 = vunpack.c.l.b16 %v1206
    %v1239 = vunpack.c.l.b16 %v1207
    %v1240 = vunpack.c.l.b16 %v1208
    %v1241 = vunpack.c.l.b16 %v1209
    %v1242 = vunpack.c.l.b16 %v1210
    %v1243 = vpack.c.b16 %v1228, %v1227
    %v1244 = vpack.c.b16 %v1230, %v1229
    %v1245 = vpack.c.b16 %v1232, %v1231
    %v1246 = vpack.c.b16 %v1234, %v1233
    %v1247 = vpack.c.b16 %v1236, %v1235
    %v1248 = vpack.c.b16 %v1238, %v1237
    %v1249 = vpack.c.b16 %v1240, %v1239
    %v1250 = vpack.c.b16 %v1242, %v1241
    %1259 = vmatprep.subr.bf16.mxu0 0
    %1260 = vmatpush1.bf16.msra.mxu0 %v1250
    %1261 = vmatprep.subr.bf16.mxu0 0
    %1262 = vmatpush1.bf16.msra.mxu0 %v1249
    %1263 = vmatprep.subr.bf16.mxu0 0
    %1264 = vmatpush1.bf16.msra.mxu0 %v1248
    %1265 = vmatprep.subr.bf16.mxu0 0
    %1266 = vmatpush1.bf16.msra.mxu0 %v1247
    %1267 = vmatprep.subr.bf16.mxu0 0
    %1268 = vmatpush1.bf16.msra.mxu0 %v1246
    %1269 = vmatprep.subr.bf16.mxu0 0
    %1270 = vmatpush1.bf16.msra.mxu0 %v1245
    %1271 = vmatprep.subr.bf16.mxu0 0
    %1272 = vmatpush1.bf16.msra.mxu0 %v1244
    %1273 = vmatprep.subr.bf16.mxu0 0
    %1274 = vmatpush1.bf16.msra.mxu0 %v1243
    %1275 = vmatprep.subr.bf16.mxu0 0
    %1276 = vmatpush2.bf16.msra.mxu0 0
    %1277 = vmatprep.subr.bf16.mxu0 0
    %1278 = vmatpush2.bf16.msra.mxu0 0
    %1279 = vmatprep.subr.bf16.mxu0 0
    %1280 = vmatpush2.bf16.msra.mxu0 0
    %1281 = vmatprep.subr.bf16.mxu0 0
    %1282 = vmatpush2.bf16.msra.mxu0 0
    %1283 = vmatprep.subr.bf16.mxu0 0
    %1284 = vmatpush2.bf16.msra.mxu0 0
    %1285 = vmatprep.subr.bf16.mxu0 0
    %1286 = vmatpush2.bf16.msra.mxu0 0
    %1287 = vmatprep.subr.bf16.mxu0 0
    %1288 = vmatpush2.bf16.msra.mxu0 0
    %1289 = vmatprep.subr.bf16.mxu0 0
    %1290 = vmatpush2.bf16.msra.mxu0 0
    %1291 = vmatprep.mubr.bf16.mxu0 0
    %1292 = vmatmul.mubr.bf16.gmra.mxu0 %v1179
    %v1293 = vpop.f32.mrf.mxu0
    %v1294 = vadd.f32 0.0, %v1293
    %v1295 = vpop.f32.mrf.mxu0
    %v1296 = vpop.f32.mrf.mxu0
    %v1297 = vadd.f32 0.0, %v1296
    %v1298 = vpop.f32.mrf.mxu0
    %1299 = vmatprep.mubr.bf16.mxu0 0
    %1300 = vmatmul.mubr.bf16.gmra.mxu0 %v1180
    %v1301 = vpop.f32.mrf.mxu0
    %v1302 = vadd.f32 0.0, %v1301
    %v1303 = vpop.f32.mrf.mxu0
    %v1304 = vpop.f32.mrf.mxu0
    %v1305 = vadd.f32 0.0, %v1304
    %v1306 = vpop.f32.mrf.mxu0
    %1307 = vmatprep.mubr.bf16.mxu0 0
    %1308 = vmatmul.mubr.bf16.gmra.mxu0 %v1181
    %v1309 = vpop.f32.mrf.mxu0
    %v1310 = vadd.f32 0.0, %v1309
    %v1311 = vpop.f32.mrf.mxu0
    %v1312 = vpop.f32.mrf.mxu0
    %v1313 = vadd.f32 0.0, %v1312
    %v1314 = vpop.f32.mrf.mxu0
    %1315 = vmatprep.mubr.bf16.mxu0 0
    %1316 = vmatmul.mubr.bf16.gmra.mxu0 %v1182
    %v1317 = vpop.f32.mrf.mxu0
    %v1318 = vadd.f32 0.0, %v1317
    %v1319 = vpop.f32.mrf.mxu0
    %v1320 = vpop.f32.mrf.mxu0
    %v1321 = vadd.f32 0.0, %v1320
    %v1322 = vpop.f32.mrf.mxu0
    %1323 = vmatprep.mubr.bf16.mxu0 0
    %1324 = vmatmul.mubr.bf16.gmra.mxu0 %v1183
    %v1325 = vpop.f32.mrf.mxu0
    %v1326 = vadd.f32 0.0, %v1325
    %v1327 = vpop.f32.mrf.mxu0
    %v1328 = vpop.f32.mrf.mxu0
    %v1329 = vadd.f32 0.0, %v1328
    %v1330 = vpop.f32.mrf.mxu0
    %1331 = vmatprep.mubr.bf16.mxu0 0
    %1332 = vmatmul.mubr.bf16.gmra.mxu0 %v1184
    %v1333 = vpop.f32.mrf.mxu0
    %v1334 = vadd.f32 0.0, %v1333
    %v1335 = vpop.f32.mrf.mxu0
    %v1336 = vpop.f32.mrf.mxu0
    %v1337 = vadd.f32 0.0, %v1336
    %v1338 = vpop.f32.mrf.mxu0
    %1339 = vmatprep.mubr.bf16.mxu0 0
    %1340 = vmatmul.mubr.bf16.gmra.mxu0 %v1185
    %v1341 = vpop.f32.mrf.mxu0
    %v1342 = vadd.f32 0.0, %v1341
    %v1343 = vpop.f32.mrf.mxu0
    %v1344 = vpop.f32.mrf.mxu0
    %v1345 = vadd.f32 0.0, %v1344
    %v1346 = vpop.f32.mrf.mxu0
    %1347 = vmatprep.mubr.bf16.mxu0 0
    %1348 = vmatmul.mubr.bf16.gmra.mxu0 %v1186
    %v1349 = vpop.f32.mrf.mxu0
    %v1350 = vadd.f32 0.0, %v1349
    %v1351 = vpop.f32.mrf.mxu0
    %v1352 = vpop.f32.mrf.mxu0
    %v1353 = vadd.f32 0.0, %v1352
    %v1354 = vpop.f32.mrf.mxu0
    %1355 = vmatprep.mubr.bf16.mxu0 0
    %1356 = vmatmul.mubr.bf16.gmra.mxu0 %v1187
    %v1357 = vpop.f32.mrf.mxu0
    %v1358 = vadd.f32 0.0, %v1357
    %v1359 = vpop.f32.mrf.mxu0
    %v1360 = vpop.f32.mrf.mxu0
    %v1361 = vadd.f32 0.0, %v1360
    %v1362 = vpop.f32.mrf.mxu0
    %1363 = vmatprep.mubr.bf16.mxu0 0
    %1364 = vmatmul.mubr.bf16.gmra.mxu0 %v1188
    %v1365 = vpop.f32.mrf.mxu0
    %v1366 = vadd.f32 0.0, %v1365
    %v1367 = vpop.f32.mrf.mxu0
    %v1368 = vpop.f32.mrf.mxu0
    %v1369 = vadd.f32 0.0, %v1368
    %v1370 = vpop.f32.mrf.mxu0
    %1371 = vmatprep.mubr.bf16.mxu0 0
    %1372 = vmatmul.mubr.bf16.gmra.mxu0 %v1189
    %v1373 = vpop.f32.mrf.mxu0
    %v1374 = vadd.f32 0.0, %v1373
    %v1375 = vpop.f32.mrf.mxu0
    %v1376 = vpop.f32.mrf.mxu0
    %v1377 = vadd.f32 0.0, %v1376
    %v1378 = vpop.f32.mrf.mxu0
    %1379 = vmatprep.mubr.bf16.mxu0 0
    %1380 = vmatmul.mubr.bf16.gmra.mxu0 %v1190
    %v1381 = vpop.f32.mrf.mxu0
    %v1382 = vadd.f32 0.0, %v1381
    %v1383 = vpop.f32.mrf.mxu0
    %v1384 = vpop.f32.mrf.mxu0
    %v1385 = vadd.f32 0.0, %v1384
    %v1386 = vpop.f32.mrf.mxu0
    %1387 = vmatprep.mubr.bf16.mxu0 0
    %1388 = vmatmul.mubr.bf16.gmra.mxu0 %v1191
    %v1389 = vpop.f32.mrf.mxu0
    %v1390 = vadd.f32 0.0, %v1389
    %v1391 = vpop.f32.mrf.mxu0
    %v1392 = vpop.f32.mrf.mxu0
    %v1393 = vadd.f32 0.0, %v1392
    %v1394 = vpop.f32.mrf.mxu0
    %1395 = vmatprep.mubr.bf16.mxu0 0
    %1396 = vmatmul.mubr.bf16.gmra.mxu0 %v1192
    %v1397 = vpop.f32.mrf.mxu0
    %v1398 = vadd.f32 0.0, %v1397
    %v1399 = vpop.f32.mrf.mxu0
    %v1400 = vpop.f32.mrf.mxu0
    %v1401 = vadd.f32 0.0, %v1400
    %v1402 = vpop.f32.mrf.mxu0
    %1403 = vmatprep.mubr.bf16.mxu0 0
    %1404 = vmatmul.mubr.bf16.gmra.mxu0 %v1193
    %v1405 = vpop.f32.mrf.mxu0
    %v1406 = vadd.f32 0.0, %v1405
    %v1407 = vpop.f32.mrf.mxu0
    %v1408 = vpop.f32.mrf.mxu0
    %v1409 = vadd.f32 0.0, %v1408
    %v1410 = vpop.f32.mrf.mxu0
    %1411 = vmatprep.mubr.bf16.mxu0 0
    %1412 = vmatmul.mubr.bf16.gmra.mxu0 %v1194
    %v1413 = vpop.f32.mrf.mxu0
    %v1414 = vadd.f32 0.0, %v1413
    %v1415 = vpop.f32.mrf.mxu0
    %v1416 = vpop.f32.mrf.mxu0
    %v1417 = vadd.f32 0.0, %v1416
    %v1418 = vpop.f32.mrf.mxu0
    %1419 = vdwg.mxu0
    %1420 = vst [vmem:[#allocation2] sm:$0xff] %v1294
    %1421 = vst [vmem:[#allocation2 + $0x8] sm:$0xff] %v1297
    %1422 = vst [vmem:[#allocation2 + $0x10] sm:$0xff] %v1302
    %1423 = vst [vmem:[#allocation2 + $0x18] sm:$0xff] %v1305
    %1424 = vst [vmem:[#allocation2 + $0x20] sm:$0xff] %v1310
    %1425 = vst [vmem:[#allocation2 + $0x28] sm:$0xff] %v1313
    %1426 = vst [vmem:[#allocation2 + $0x30] sm:$0xff] %v1318
    %1427 = vst [vmem:[#allocation2 + $0x38] sm:$0xff] %v1321
    %1428 = vst [vmem:[#allocation2 + $0x40] sm:$0xff] %v1326
    %1429 = vst [vmem:[#allocation2 + $0x48] sm:$0xff] %v1329
    %1430 = vst [vmem:[#allocation2 + $0x50] sm:$0xff] %v1334
    %1431 = vst [vmem:[#allocation2 + $0x58] sm:$0xff] %v1337
    %1432 = vst [vmem:[#allocation2 + $0x60] sm:$0xff] %v1342
    %1433 = vst [vmem:[#allocation2 + $0x68] sm:$0xff] %v1345
    %1434 = vst [vmem:[#allocation2 + $0x70] sm:$0xff] %v1350
    %1435 = vst [vmem:[#allocation2 + $0x78] sm:$0xff] %v1353
    %1436 = vst [vmem:[#allocation2 + $0x80] sm:$0xff] %v1358
    %1437 = vst [vmem:[#allocation2 + $0x88] sm:$0xff] %v1361
    %1438 = vst [vmem:[#allocation2 + $0x90] sm:$0xff] %v1366
    %1439 = vst [vmem:[#allocation2 + $0x98] sm:$0xff] %v1369
    %1440 = vst [vmem:[#allocation2 + $0xa0] sm:$0xff] %v1374
    %1441 = vst [vmem:[#allocation2 + $0xa8] sm:$0xff] %v1377
    %1442 = vst [vmem:[#allocation2 + $0xb0] sm:$0xff] %v1382
    %1443 = vst [vmem:[#allocation2 + $0xb8] sm:$0xff] %v1385
    %1444 = vst [vmem:[#allocation2 + $0xc0] sm:$0xff] %v1390
    %1445 = vst [vmem:[#allocation2 + $0xc8] sm:$0xff] %v1393
    %1446 = vst [vmem:[#allocation2 + $0xd0] sm:$0xff] %v1398
    %1447 = vst [vmem:[#allocation2 + $0xd8] sm:$0xff] %v1401
    %1448 = vst [vmem:[#allocation2 + $0xe0] sm:$0xff] %v1406
    %1449 = vst [vmem:[#allocation2 + $0xe8] sm:$0xff] %v1409
    %1450 = vst [vmem:[#allocation2 + $0xf0] sm:$0xff] %v1414
    %1451 = vst [vmem:[#allocation2 + $0xf8] sm:$0xff] %v1417
    %s1452 = scalar_lea.vmem %s0, 256
    %v1453 = vld [vmem:[%s1452] sm:$0xff]
    %v1454 = vld [vmem:[%s1452 + $0x8] sm:$0xff]
    %v1455 = vld [vmem:[%s1452 + $0x10] sm:$0xff]
    %v1456 = vld [vmem:[%s1452 + $0x18] sm:$0xff]
    %v1457 = vld [vmem:[%s1452 + $0x20] sm:$0xff]
    %v1458 = vld [vmem:[%s1452 + $0x28] sm:$0xff]
    %v1459 = vld [vmem:[%s1452 + $0x30] sm:$0xff]
    %v1460 = vld [vmem:[%s1452 + $0x38] sm:$0xff]
    %v1461 = vld [vmem:[%s1452 + $0x40] sm:$0xff]
    %v1462 = vld [vmem:[%s1452 + $0x48] sm:$0xff]
    %v1463 = vld [vmem:[%s1452 + $0x50] sm:$0xff]
    %v1464 = vld [vmem:[%s1452 + $0x58] sm:$0xff]
    %v1465 = vld [vmem:[%s1452 + $0x60] sm:$0xff]
    %v1466 = vld [vmem:[%s1452 + $0x68] sm:$0xff]
    %v1467 = vld [vmem:[%s1452 + $0x70] sm:$0xff]
    %v1468 = vld [vmem:[%s1452 + $0x78] sm:$0xff]
    %v1469 = vld [vmem:[%s1452 + $0x80] sm:$0xff]
    %v1470 = vld [vmem:[%s1452 + $0x88] sm:$0xff]
    %v1471 = vld [vmem:[%s1452 + $0x90] sm:$0xff]
    %v1472 = vld [vmem:[%s1452 + $0x98] sm:$0xff]
    %v1473 = vld [vmem:[%s1452 + $0xa0] sm:$0xff]
    %v1474 = vld [vmem:[%s1452 + $0xa8] sm:$0xff]
    %v1475 = vld [vmem:[%s1452 + $0xb0] sm:$0xff]
    %v1476 = vld [vmem:[%s1452 + $0xb8] sm:$0xff]
    %v1477 = vld [vmem:[%s1452 + $0xc0] sm:$0xff]
    %v1478 = vld [vmem:[%s1452 + $0xc8] sm:$0xff]
    %v1479 = vld [vmem:[%s1452 + $0xd0] sm:$0xff]
    %v1480 = vld [vmem:[%s1452 + $0xd8] sm:$0xff]
    %v1481 = vld [vmem:[%s1452 + $0xe0] sm:$0xff]
    %v1482 = vld [vmem:[%s1452 + $0xe8] sm:$0xff]
    %v1483 = vld [vmem:[%s1452 + $0xf0] sm:$0xff]
    %v1484 = vld [vmem:[%s1452 + $0xf8] sm:$0xff]
    %1486 = vset.pattern.permute.xlu0 0
    %1487 = vperm.xlu0 %1486, %v1453
    %v1488 = vpop.permute.xlu0 %1487
    %1491 = vset.pattern.permute.xlu0 0
    %1492 = vperm.xlu0 %1491, %v1454
    %v1493 = vpop.permute.xlu0 %1492
    %1496 = vset.pattern.permute.xlu0 0
    %1497 = vperm.xlu0 %1496, %v1455
    %v1498 = vpop.permute.xlu0 %1497
    %1501 = vset.pattern.permute.xlu0 0
    %1502 = vperm.xlu0 %1501, %v1456
    %v1503 = vpop.permute.xlu0 %1502
    %1506 = vset.pattern.permute.xlu0 0
    %1507 = vperm.xlu0 %1506, %v1457
    %v1508 = vpop.permute.xlu0 %1507
    %1511 = vset.pattern.permute.xlu0 0
    %1512 = vperm.xlu0 %1511, %v1458
    %v1513 = vpop.permute.xlu0 %1512
    %1516 = vset.pattern.permute.xlu0 0
    %1517 = vperm.xlu0 %1516, %v1459
    %v1518 = vpop.permute.xlu0 %1517
    %1521 = vset.pattern.permute.xlu0 0
    %1522 = vperm.xlu0 %1521, %v1460
    %v1523 = vpop.permute.xlu0 %1522
    %1526 = vset.pattern.permute.xlu0 0
    %1527 = vperm.xlu0 %1526, %v1461
    %v1528 = vpop.permute.xlu0 %1527
    %1531 = vset.pattern.permute.xlu0 0
    %1532 = vperm.xlu0 %1531, %v1462
    %v1533 = vpop.permute.xlu0 %1532
    %1536 = vset.pattern.permute.xlu0 0
    %1537 = vperm.xlu0 %1536, %v1463
    %v1538 = vpop.permute.xlu0 %1537
    %1541 = vset.pattern.permute.xlu0 0
    %1542 = vperm.xlu0 %1541, %v1464
    %v1543 = vpop.permute.xlu0 %1542
    %1546 = vset.pattern.permute.xlu0 0
    %1547 = vperm.xlu0 %1546, %v1465
    %v1548 = vpop.permute.xlu0 %1547
    %1551 = vset.pattern.permute.xlu0 0
    %1552 = vperm.xlu0 %1551, %v1466
    %v1553 = vpop.permute.xlu0 %1552
    %1556 = vset.pattern.permute.xlu0 0
    %1557 = vperm.xlu0 %1556, %v1467
    %v1558 = vpop.permute.xlu0 %1557
    %1561 = vset.pattern.permute.xlu0 0
    %1562 = vperm.xlu0 %1561, %v1468
    %v1563 = vpop.permute.xlu0 %1562
    %1566 = vset.pattern.permute.xlu0 0
    %1567 = vperm.xlu0 %1566, %v1469
    %v1568 = vpop.permute.xlu0 %1567
    %1571 = vset.pattern.permute.xlu0 0
    %1572 = vperm.xlu0 %1571, %v1470
    %v1573 = vpop.permute.xlu0 %1572
    %1576 = vset.pattern.permute.xlu0 0
    %1577 = vperm.xlu0 %1576, %v1471
    %v1578 = vpop.permute.xlu0 %1577
    %1581 = vset.pattern.permute.xlu0 0
    %1582 = vperm.xlu0 %1581, %v1472
    %v1583 = vpop.permute.xlu0 %1582
    %1586 = vset.pattern.permute.xlu0 0
    %1587 = vperm.xlu0 %1586, %v1473
    %v1588 = vpop.permute.xlu0 %1587
    %1591 = vset.pattern.permute.xlu0 0
    %1592 = vperm.xlu0 %1591, %v1474
    %v1593 = vpop.permute.xlu0 %1592
    %1596 = vset.pattern.permute.xlu0 0
    %1597 = vperm.xlu0 %1596, %v1475
    %v1598 = vpop.permute.xlu0 %1597
    %1601 = vset.pattern.permute.xlu0 0
    %1602 = vperm.xlu0 %1601, %v1476
    %v1603 = vpop.permute.xlu0 %1602
    %1606 = vset.pattern.permute.xlu0 0
    %1607 = vperm.xlu0 %1606, %v1477
    %v1608 = vpop.permute.xlu0 %1607
    %1611 = vset.pattern.permute.xlu0 0
    %1612 = vperm.xlu0 %1611, %v1478
    %v1613 = vpop.permute.xlu0 %1612
    %1616 = vset.pattern.permute.xlu0 0
    %1617 = vperm.xlu0 %1616, %v1479
    %v1618 = vpop.permute.xlu0 %1617
    %1621 = vset.pattern.permute.xlu0 0
    %1622 = vperm.xlu0 %1621, %v1480
    %v1623 = vpop.permute.xlu0 %1622
    %1626 = vset.pattern.permute.xlu0 0
    %1627 = vperm.xlu0 %1626, %v1481
    %v1628 = vpop.permute.xlu0 %1627
    %1631 = vset.pattern.permute.xlu0 0
    %1632 = vperm.xlu0 %1631, %v1482
    %v1633 = vpop.permute.xlu0 %1632
    %1636 = vset.pattern.permute.xlu0 0
    %1637 = vperm.xlu0 %1636, %v1483
    %v1638 = vpop.permute.xlu0 %1637
    %1641 = vset.pattern.permute.xlu0 0
    %1642 = vperm.xlu0 %1641, %v1484
    %v1643 = vpop.permute.xlu0 %1642
    %v1645 = vmul.f32 %v1488, %v238
    %v1646 = vmul.f32 %v1493, %v238
    %v1647 = vmul.f32 %v1498, %v238
    %v1648 = vmul.f32 %v1503, %v238
    %v1649 = vmul.f32 %v1508, %v238
    %v1650 = vmul.f32 %v1513, %v238
    %v1651 = vmul.f32 %v1518, %v238
    %v1652 = vmul.f32 %v1523, %v238
    %v1653 = vmul.f32 %v1528, %v238
    %v1654 = vmul.f32 %v1533, %v238
    %v1655 = vmul.f32 %v1538, %v238
    %v1656 = vmul.f32 %v1543, %v238
    %v1657 = vmul.f32 %v1548, %v238
    %v1658 = vmul.f32 %v1553, %v238
    %v1659 = vmul.f32 %v1558, %v238
    %v1660 = vmul.f32 %v1563, %v238
    %v1661 = vmul.f32 %v1568, %v238
    %v1662 = vmul.f32 %v1573, %v238
    %v1663 = vmul.f32 %v1578, %v238
    %v1664 = vmul.f32 %v1583, %v238
    %v1665 = vmul.f32 %v1588, %v238
    %v1666 = vmul.f32 %v1593, %v238
    %v1667 = vmul.f32 %v1598, %v238
    %v1668 = vmul.f32 %v1603, %v238
    %v1669 = vmul.f32 %v1608, %v238
    %v1670 = vmul.f32 %v1613, %v238
    %v1671 = vmul.f32 %v1618, %v238
    %v1672 = vmul.f32 %v1623, %v238
    %v1673 = vmul.f32 %v1628, %v238
    %v1674 = vmul.f32 %v1633, %v238
    %v1675 = vmul.f32 %v1638, %v238
    %v1676 = vmul.f32 %v1643, %v238
    %v1677 = vadd.f32 %v1645, %v276
    %v1678 = vadd.f32 %v1646, %v276
    %v1679 = vadd.f32 %v1647, %v276
    %v1680 = vadd.f32 %v1648, %v276
    %v1681 = vadd.f32 %v1649, %v276
    %v1682 = vadd.f32 %v1650, %v276
    %v1683 = vadd.f32 %v1651, %v276
    %v1684 = vadd.f32 %v1652, %v276
    %v1685 = vadd.f32 %v1653, %v276
    %v1686 = vadd.f32 %v1654, %v276
    %v1687 = vadd.f32 %v1655, %v276
    %v1688 = vadd.f32 %v1656, %v276
    %v1689 = vadd.f32 %v1657, %v276
    %v1690 = vadd.f32 %v1658, %v276
    %v1691 = vadd.f32 %v1659, %v276
    %v1692 = vadd.f32 %v1660, %v276
    %v1693 = vadd.f32 %v1661, %v276
    %v1694 = vadd.f32 %v1662, %v276
    %v1695 = vadd.f32 %v1663, %v276
    %v1696 = vadd.f32 %v1664, %v276
    %v1697 = vadd.f32 %v1665, %v276
    %v1698 = vadd.f32 %v1666, %v276
    %v1699 = vadd.f32 %v1667, %v276
    %v1700 = vadd.f32 %v1668, %v276
    %v1701 = vadd.f32 %v1669, %v276
    %v1702 = vadd.f32 %v1670, %v276
    %v1703 = vadd.f32 %v1671, %v276
    %v1704 = vadd.f32 %v1672, %v276
    %v1705 = vadd.f32 %v1673, %v276
    %v1706 = vadd.f32 %v1674, %v276
    %v1707 = vadd.f32 %v1675, %v276
    %v1708 = vadd.f32 %v1676, %v276
    %v1709 = vtanh.pop %v1677
    %v1710 = vtanh.pop %v1678
    %v1711 = vtanh.pop %v1679
    %v1712 = vtanh.pop %v1680
    %v1713 = vtanh.pop %v1681
    %v1714 = vtanh.pop %v1682
    %v1715 = vtanh.pop %v1683
    %v1716 = vtanh.pop %v1684
    %v1717 = vtanh.pop %v1685
    %v1718 = vtanh.pop %v1686
    %v1719 = vtanh.pop %v1687
    %v1720 = vtanh.pop %v1688
    %v1721 = vtanh.pop %v1689
    %v1722 = vtanh.pop %v1690
    %v1723 = vtanh.pop %v1691
    %v1724 = vtanh.pop %v1692
    %v1725 = vtanh.pop %v1693
    %v1726 = vtanh.pop %v1694
    %v1727 = vtanh.pop %v1695
    %v1728 = vtanh.pop %v1696
    %v1729 = vtanh.pop %v1697
    %v1730 = vtanh.pop %v1698
    %v1731 = vtanh.pop %v1699
    %v1732 = vtanh.pop %v1700
    %v1733 = vtanh.pop %v1701
    %v1734 = vtanh.pop %v1702
    %v1735 = vtanh.pop %v1703
    %v1736 = vtanh.pop %v1704
    %v1737 = vtanh.pop %v1705
    %v1738 = vtanh.pop %v1706
    %v1739 = vtanh.pop %v1707
    %v1740 = vtanh.pop %v1708
    %v1741 = vpack.c.bf16 %v1710, %v1709
    %v1742 = vpack.c.bf16 %v1712, %v1711
    %v1743 = vpack.c.bf16 %v1714, %v1713
    %v1744 = vpack.c.bf16 %v1716, %v1715
    %v1745 = vpack.c.bf16 %v1718, %v1717
    %v1746 = vpack.c.bf16 %v1720, %v1719
    %v1747 = vpack.c.bf16 %v1722, %v1721
    %v1748 = vpack.c.bf16 %v1724, %v1723
    %v1749 = vpack.c.bf16 %v1726, %v1725
    %v1750 = vpack.c.bf16 %v1728, %v1727
    %v1751 = vpack.c.bf16 %v1730, %v1729
    %v1752 = vpack.c.bf16 %v1732, %v1731
    %v1753 = vpack.c.bf16 %v1734, %v1733
    %v1754 = vpack.c.bf16 %v1736, %v1735
    %v1755 = vpack.c.bf16 %v1738, %v1737
    %v1756 = vpack.c.bf16 %v1740, %v1739
    %v1757 = vld [vmem:[%s3] sm:$0xf]
    %v1758 = vld [vmem:[%s3 + $0x4] sm:$0xf]
    %v1759 = vld [vmem:[%s3 + $0x8] sm:$0xf]
    %v1760 = vld [vmem:[%s3 + $0xc] sm:$0xf]
    %v1761 = vld [vmem:[%s3 + $0x10] sm:$0xf]
    %v1762 = vld [vmem:[%s3 + $0x14] sm:$0xf]
    %v1763 = vld [vmem:[%s3 + $0x18] sm:$0xf]
    %v1764 = vld [vmem:[%s3 + $0x1c] sm:$0xf]
    %v1765 = vld [vmem:[%s3 + $0x20] sm:$0xf]
    %v1766 = vld [vmem:[%s3 + $0x24] sm:$0xf]
    %v1767 = vld [vmem:[%s3 + $0x28] sm:$0xf]
    %v1768 = vld [vmem:[%s3 + $0x2c] sm:$0xf]
    %v1769 = vld [vmem:[%s3 + $0x30] sm:$0xf]
    %v1770 = vld [vmem:[%s3 + $0x34] sm:$0xf]
    %v1771 = vld [vmem:[%s3 + $0x38] sm:$0xf]
    %v1772 = vld [vmem:[%s3 + $0x3c] sm:$0xf]
    %v1789 = vunpack.c.l.b16 %v1757
    %v1790 = vunpack.c.l.b16 %v1758
    %v1791 = vunpack.c.l.b16 %v1759
    %v1792 = vunpack.c.l.b16 %v1760
    %v1793 = vunpack.c.l.b16 %v1761
    %v1794 = vunpack.c.l.b16 %v1762
    %v1795 = vunpack.c.l.b16 %v1763
    %v1796 = vunpack.c.l.b16 %v1764
    %v1797 = vunpack.c.l.b16 %v1765
    %v1798 = vunpack.c.l.b16 %v1766
    %v1799 = vunpack.c.l.b16 %v1767
    %v1800 = vunpack.c.l.b16 %v1768
    %v1801 = vunpack.c.l.b16 %v1769
    %v1802 = vunpack.c.l.b16 %v1770
    %v1803 = vunpack.c.l.b16 %v1771
    %v1804 = vunpack.c.l.b16 %v1772
    %v1805 = vpack.c.b16 %v1790, %v1789
    %v1806 = vpack.c.b16 %v1792, %v1791
    %v1807 = vpack.c.b16 %v1794, %v1793
    %v1808 = vpack.c.b16 %v1796, %v1795
    %v1809 = vpack.c.b16 %v1798, %v1797
    %v1810 = vpack.c.b16 %v1800, %v1799
    %v1811 = vpack.c.b16 %v1802, %v1801
    %v1812 = vpack.c.b16 %v1804, %v1803
    %1821 = vmatprep.subr.bf16.mxu0 0
    %1822 = vmatpush1.bf16.msra.mxu0 %v1812
    %1823 = vmatprep.subr.bf16.mxu0 0
    %1824 = vmatpush1.bf16.msra.mxu0 %v1811
    %1825 = vmatprep.subr.bf16.mxu0 0
    %1826 = vmatpush1.bf16.msra.mxu0 %v1810
    %1827 = vmatprep.subr.bf16.mxu0 0
    %1828 = vmatpush1.bf16.msra.mxu0 %v1809
    %1829 = vmatprep.subr.bf16.mxu0 0
    %1830 = vmatpush1.bf16.msra.mxu0 %v1808
    %1831 = vmatprep.subr.bf16.mxu0 0
    %1832 = vmatpush1.bf16.msra.mxu0 %v1807
    %1833 = vmatprep.subr.bf16.mxu0 0
    %1834 = vmatpush1.bf16.msra.mxu0 %v1806
    %1835 = vmatprep.subr.bf16.mxu0 0
    %1836 = vmatpush1.bf16.msra.mxu0 %v1805
    %1837 = vmatprep.subr.bf16.mxu0 0
    %1838 = vmatpush2.bf16.msra.mxu0 0
    %1839 = vmatprep.subr.bf16.mxu0 0
    %1840 = vmatpush2.bf16.msra.mxu0 0
    %1841 = vmatprep.subr.bf16.mxu0 0
    %1842 = vmatpush2.bf16.msra.mxu0 0
    %1843 = vmatprep.subr.bf16.mxu0 0
    %1844 = vmatpush2.bf16.msra.mxu0 0
    %1845 = vmatprep.subr.bf16.mxu0 0
    %1846 = vmatpush2.bf16.msra.mxu0 0
    %1847 = vmatprep.subr.bf16.mxu0 0
    %1848 = vmatpush2.bf16.msra.mxu0 0
    %1849 = vmatprep.subr.bf16.mxu0 0
    %1850 = vmatpush2.bf16.msra.mxu0 0
    %1851 = vmatprep.subr.bf16.mxu0 0
    %1852 = vmatpush2.bf16.msra.mxu0 0
    %1853 = vmatprep.mubr.bf16.mxu0 0
    %1854 = vmatmul.mubr.bf16.gmra.mxu0 %v1741
    %v1855 = vpop.f32.mrf.mxu0
    %v1856 = vadd.f32 %v378, %v1855
    %v1857 = vpop.f32.mrf.mxu0
    %v1858 = vpop.f32.mrf.mxu0
    %v1859 = vadd.f32 %v378, %v1858
    %v1860 = vpop.f32.mrf.mxu0
    %1861 = vmatprep.mubr.bf16.mxu0 0
    %1862 = vmatmul.mubr.bf16.gmra.mxu0 %v1742
    %v1863 = vpop.f32.mrf.mxu0
    %v1864 = vadd.f32 %v378, %v1863
    %v1865 = vpop.f32.mrf.mxu0
    %v1866 = vpop.f32.mrf.mxu0
    %v1867 = vadd.f32 %v378, %v1866
    %v1868 = vpop.f32.mrf.mxu0
    %1869 = vmatprep.mubr.bf16.mxu0 0
    %1870 = vmatmul.mubr.bf16.gmra.mxu0 %v1743
    %v1871 = vpop.f32.mrf.mxu0
    %v1872 = vadd.f32 %v378, %v1871
    %v1873 = vpop.f32.mrf.mxu0
    %v1874 = vpop.f32.mrf.mxu0
    %v1875 = vadd.f32 %v378, %v1874
    %v1876 = vpop.f32.mrf.mxu0
    %1877 = vmatprep.mubr.bf16.mxu0 0
    %1878 = vmatmul.mubr.bf16.gmra.mxu0 %v1744
    %v1879 = vpop.f32.mrf.mxu0
    %v1880 = vadd.f32 %v378, %v1879
    %v1881 = vpop.f32.mrf.mxu0
    %v1882 = vpop.f32.mrf.mxu0
    %v1883 = vadd.f32 %v378, %v1882
    %v1884 = vpop.f32.mrf.mxu0
    %1885 = vmatprep.mubr.bf16.mxu0 0
    %1886 = vmatmul.mubr.bf16.gmra.mxu0 %v1745
    %v1887 = vpop.f32.mrf.mxu0
    %v1888 = vadd.f32 %v378, %v1887
    %v1889 = vpop.f32.mrf.mxu0
    %v1890 = vpop.f32.mrf.mxu0
    %v1891 = vadd.f32 %v378, %v1890
    %v1892 = vpop.f32.mrf.mxu0
    %1893 = vmatprep.mubr.bf16.mxu0 0
    %1894 = vmatmul.mubr.bf16.gmra.mxu0 %v1746
    %v1895 = vpop.f32.mrf.mxu0
    %v1896 = vadd.f32 %v378, %v1895
    %v1897 = vpop.f32.mrf.mxu0
    %v1898 = vpop.f32.mrf.mxu0
    %v1899 = vadd.f32 %v378, %v1898
    %v1900 = vpop.f32.mrf.mxu0
    %1901 = vmatprep.mubr.bf16.mxu0 0
    %1902 = vmatmul.mubr.bf16.gmra.mxu0 %v1747
    %v1903 = vpop.f32.mrf.mxu0
    %v1904 = vadd.f32 %v378, %v1903
    %v1905 = vpop.f32.mrf.mxu0
    %v1906 = vpop.f32.mrf.mxu0
    %v1907 = vadd.f32 %v378, %v1906
    %v1908 = vpop.f32.mrf.mxu0
    %1909 = vmatprep.mubr.bf16.mxu0 0
    %1910 = vmatmul.mubr.bf16.gmra.mxu0 %v1748
    %v1911 = vpop.f32.mrf.mxu0
    %v1912 = vadd.f32 %v378, %v1911
    %v1913 = vpop.f32.mrf.mxu0
    %v1914 = vpop.f32.mrf.mxu0
    %v1915 = vadd.f32 %v378, %v1914
    %v1916 = vpop.f32.mrf.mxu0
    %1917 = vmatprep.mubr.bf16.mxu0 0
    %1918 = vmatmul.mubr.bf16.gmra.mxu0 %v1749
    %v1919 = vpop.f32.mrf.mxu0
    %v1920 = vadd.f32 %v378, %v1919
    %v1921 = vpop.f32.mrf.mxu0
    %v1922 = vpop.f32.mrf.mxu0
    %v1923 = vadd.f32 %v378, %v1922
    %v1924 = vpop.f32.mrf.mxu0
    %1925 = vmatprep.mubr.bf16.mxu0 0
    %1926 = vmatmul.mubr.bf16.gmra.mxu0 %v1750
    %v1927 = vpop.f32.mrf.mxu0
    %v1928 = vadd.f32 %v378, %v1927
    %v1929 = vpop.f32.mrf.mxu0
    %v1930 = vpop.f32.mrf.mxu0
    %v1931 = vadd.f32 %v378, %v1930
    %v1932 = vpop.f32.mrf.mxu0
    %1933 = vmatprep.mubr.bf16.mxu0 0
    %1934 = vmatmul.mubr.bf16.gmra.mxu0 %v1751
    %v1935 = vpop.f32.mrf.mxu0
    %v1936 = vadd.f32 %v378, %v1935
    %v1937 = vpop.f32.mrf.mxu0
    %v1938 = vpop.f32.mrf.mxu0
    %v1939 = vadd.f32 %v378, %v1938
    %v1940 = vpop.f32.mrf.mxu0
    %1941 = vmatprep.mubr.bf16.mxu0 0
    %1942 = vmatmul.mubr.bf16.gmra.mxu0 %v1752
    %v1943 = vpop.f32.mrf.mxu0
    %v1944 = vadd.f32 %v378, %v1943
    %v1945 = vpop.f32.mrf.mxu0
    %v1946 = vpop.f32.mrf.mxu0
    %v1947 = vadd.f32 %v378, %v1946
    %v1948 = vpop.f32.mrf.mxu0
    %1949 = vmatprep.mubr.bf16.mxu0 0
    %1950 = vmatmul.mubr.bf16.gmra.mxu0 %v1753
    %v1951 = vpop.f32.mrf.mxu0
    %v1952 = vadd.f32 %v378, %v1951
    %v1953 = vpop.f32.mrf.mxu0
    %v1954 = vpop.f32.mrf.mxu0
    %v1955 = vadd.f32 %v378, %v1954
    %v1956 = vpop.f32.mrf.mxu0
    %1957 = vmatprep.mubr.bf16.mxu0 0
    %1958 = vmatmul.mubr.bf16.gmra.mxu0 %v1754
    %v1959 = vpop.f32.mrf.mxu0
    %v1960 = vadd.f32 %v378, %v1959
    %v1961 = vpop.f32.mrf.mxu0
    %v1962 = vpop.f32.mrf.mxu0
    %v1963 = vadd.f32 %v378, %v1962
    %v1964 = vpop.f32.mrf.mxu0
    %1965 = vmatprep.mubr.bf16.mxu0 0
    %1966 = vmatmul.mubr.bf16.gmra.mxu0 %v1755
    %v1967 = vpop.f32.mrf.mxu0
    %v1968 = vadd.f32 %v378, %v1967
    %v1969 = vpop.f32.mrf.mxu0
    %v1970 = vpop.f32.mrf.mxu0
    %v1971 = vadd.f32 %v378, %v1970
    %v1972 = vpop.f32.mrf.mxu0
    %1973 = vmatprep.mubr.bf16.mxu0 0
    %1974 = vmatmul.mubr.bf16.gmra.mxu0 %v1756
    %v1975 = vpop.f32.mrf.mxu0
    %v1976 = vadd.f32 %v378, %v1975
    %v1977 = vpop.f32.mrf.mxu0
    %v1978 = vpop.f32.mrf.mxu0
    %v1979 = vadd.f32 %v378, %v1978
    %v1980 = vpop.f32.mrf.mxu0
    %1981 = vdwg.mxu0
    %v1982 = vtanh.pop %v1856
    %v1983 = vtanh.pop %v1859
    %v1984 = vtanh.pop %v1864
    %v1985 = vtanh.pop %v1867
    %v1986 = vtanh.pop %v1872
    %v1987 = vtanh.pop %v1875
    %v1988 = vtanh.pop %v1880
    %v1989 = vtanh.pop %v1883
    %v1990 = vtanh.pop %v1888
    %v1991 = vtanh.pop %v1891
    %v1992 = vtanh.pop %v1896
    %v1993 = vtanh.pop %v1899
    %v1994 = vtanh.pop %v1904
    %v1995 = vtanh.pop %v1907
    %v1996 = vtanh.pop %v1912
    %v1997 = vtanh.pop %v1915
    %v1998 = vtanh.pop %v1920
    %v1999 = vtanh.pop %v1923
    %v2000 = vtanh.pop %v1928
    %v2001 = vtanh.pop %v1931
    %v2002 = vtanh.pop %v1936
    %v2003 = vtanh.pop %v1939
    %v2004 = vtanh.pop %v1944
    %v2005 = vtanh.pop %v1947
    %v2006 = vtanh.pop %v1952
    %v2007 = vtanh.pop %v1955
    %v2008 = vtanh.pop %v1960
    %v2009 = vtanh.pop %v1963
    %v2010 = vtanh.pop %v1968
    %v2011 = vtanh.pop %v1971
    %v2012 = vtanh.pop %v1976
    %v2013 = vtanh.pop %v1979
    %v2014 = vpack.c.bf16 %v1983, %v1982
    %v2015 = vpack.c.bf16 %v1985, %v1984
    %v2016 = vpack.c.bf16 %v1987, %v1986
    %v2017 = vpack.c.bf16 %v1989, %v1988
    %v2018 = vpack.c.bf16 %v1991, %v1990
    %v2019 = vpack.c.bf16 %v1993, %v1992
    %v2020 = vpack.c.bf16 %v1995, %v1994
    %v2021 = vpack.c.bf16 %v1997, %v1996
    %v2022 = vpack.c.bf16 %v1999, %v1998
    %v2023 = vpack.c.bf16 %v2001, %v2000
    %v2024 = vpack.c.bf16 %v2003, %v2002
    %v2025 = vpack.c.bf16 %v2005, %v2004
    %v2026 = vpack.c.bf16 %v2007, %v2006
    %v2027 = vpack.c.bf16 %v2009, %v2008
    %v2028 = vpack.c.bf16 %v2011, %v2010
    %v2029 = vpack.c.bf16 %v2013, %v2012
    %v2030 = vld [vmem:[%s5] sm:$0xf]
    %v2031 = vld [vmem:[%s5 + $0x4] sm:$0xf]
    %v2032 = vld [vmem:[%s5 + $0x8] sm:$0xf]
    %v2033 = vld [vmem:[%s5 + $0xc] sm:$0xf]
    %v2034 = vld [vmem:[%s5 + $0x10] sm:$0xf]
    %v2035 = vld [vmem:[%s5 + $0x14] sm:$0xf]
    %v2036 = vld [vmem:[%s5 + $0x18] sm:$0xf]
    %v2037 = vld [vmem:[%s5 + $0x1c] sm:$0xf]
    %v2038 = vld [vmem:[%s5 + $0x20] sm:$0xf]
    %v2039 = vld [vmem:[%s5 + $0x24] sm:$0xf]
    %v2040 = vld [vmem:[%s5 + $0x28] sm:$0xf]
    %v2041 = vld [vmem:[%s5 + $0x2c] sm:$0xf]
    %v2042 = vld [vmem:[%s5 + $0x30] sm:$0xf]
    %v2043 = vld [vmem:[%s5 + $0x34] sm:$0xf]
    %v2044 = vld [vmem:[%s5 + $0x38] sm:$0xf]
    %v2045 = vld [vmem:[%s5 + $0x3c] sm:$0xf]
    %v2062 = vunpack.c.l.b16 %v2030
    %v2063 = vunpack.c.l.b16 %v2031
    %v2064 = vunpack.c.l.b16 %v2032
    %v2065 = vunpack.c.l.b16 %v2033
    %v2066 = vunpack.c.l.b16 %v2034
    %v2067 = vunpack.c.l.b16 %v2035
    %v2068 = vunpack.c.l.b16 %v2036
    %v2069 = vunpack.c.l.b16 %v2037
    %v2070 = vunpack.c.l.b16 %v2038
    %v2071 = vunpack.c.l.b16 %v2039
    %v2072 = vunpack.c.l.b16 %v2040
    %v2073 = vunpack.c.l.b16 %v2041
    %v2074 = vunpack.c.l.b16 %v2042
    %v2075 = vunpack.c.l.b16 %v2043
    %v2076 = vunpack.c.l.b16 %v2044
    %v2077 = vunpack.c.l.b16 %v2045
    %v2078 = vpack.c.b16 %v2063, %v2062
    %v2079 = vpack.c.b16 %v2065, %v2064
    %v2080 = vpack.c.b16 %v2067, %v2066
    %v2081 = vpack.c.b16 %v2069, %v2068
    %v2082 = vpack.c.b16 %v2071, %v2070
    %v2083 = vpack.c.b16 %v2073, %v2072
    %v2084 = vpack.c.b16 %v2075, %v2074
    %v2085 = vpack.c.b16 %v2077, %v2076
    %2094 = vmatprep.subr.bf16.mxu0 0
    %2095 = vmatpush1.bf16.msra.mxu0 %v2085
    %2096 = vmatprep.subr.bf16.mxu0 0
    %2097 = vmatpush1.bf16.msra.mxu0 %v2084
    %2098 = vmatprep.subr.bf16.mxu0 0
    %2099 = vmatpush1.bf16.msra.mxu0 %v2083
    %2100 = vmatprep.subr.bf16.mxu0 0
    %2101 = vmatpush1.bf16.msra.mxu0 %v2082
    %2102 = vmatprep.subr.bf16.mxu0 0
    %2103 = vmatpush1.bf16.msra.mxu0 %v2081
    %2104 = vmatprep.subr.bf16.mxu0 0
    %2105 = vmatpush1.bf16.msra.mxu0 %v2080
    %2106 = vmatprep.subr.bf16.mxu0 0
    %2107 = vmatpush1.bf16.msra.mxu0 %v2079
    %2108 = vmatprep.subr.bf16.mxu0 0
    %2109 = vmatpush1.bf16.msra.mxu0 %v2078
    %2110 = vmatprep.subr.bf16.mxu0 0
    %2111 = vmatpush2.bf16.msra.mxu0 0
    %2112 = vmatprep.subr.bf16.mxu0 0
    %2113 = vmatpush2.bf16.msra.mxu0 0
    %2114 = vmatprep.subr.bf16.mxu0 0
    %2115 = vmatpush2.bf16.msra.mxu0 0
    %2116 = vmatprep.subr.bf16.mxu0 0
    %2117 = vmatpush2.bf16.msra.mxu0 0
    %2118 = vmatprep.subr.bf16.mxu0 0
    %2119 = vmatpush2.bf16.msra.mxu0 0
    %2120 = vmatprep.subr.bf16.mxu0 0
    %2121 = vmatpush2.bf16.msra.mxu0 0
    %2122 = vmatprep.subr.bf16.mxu0 0
    %2123 = vmatpush2.bf16.msra.mxu0 0
    %2124 = vmatprep.subr.bf16.mxu0 0
    %2125 = vmatpush2.bf16.msra.mxu0 0
    %2126 = vmatprep.mubr.bf16.mxu0 0
    %2127 = vmatmul.mubr.bf16.gmra.mxu0 %v2014
    %v2128 = vpop.f32.mrf.mxu0
    %v2129 = vadd.f32 %v657, %v2128
    %v2130 = vpop.f32.mrf.mxu0
    %v2131 = vpop.f32.mrf.mxu0
    %v2132 = vadd.f32 %v657, %v2131
    %v2133 = vpop.f32.mrf.mxu0
    %2134 = vmatprep.mubr.bf16.mxu0 0
    %2135 = vmatmul.mubr.bf16.gmra.mxu0 %v2015
    %v2136 = vpop.f32.mrf.mxu0
    %v2137 = vadd.f32 %v657, %v2136
    %v2138 = vpop.f32.mrf.mxu0
    %v2139 = vpop.f32.mrf.mxu0
    %v2140 = vadd.f32 %v657, %v2139
    %v2141 = vpop.f32.mrf.mxu0
    %2142 = vmatprep.mubr.bf16.mxu0 0
    %2143 = vmatmul.mubr.bf16.gmra.mxu0 %v2016
    %v2144 = vpop.f32.mrf.mxu0
    %v2145 = vadd.f32 %v657, %v2144
    %v2146 = vpop.f32.mrf.mxu0
    %v2147 = vpop.f32.mrf.mxu0
    %v2148 = vadd.f32 %v657, %v2147
    %v2149 = vpop.f32.mrf.mxu0
    %2150 = vmatprep.mubr.bf16.mxu0 0
    %2151 = vmatmul.mubr.bf16.gmra.mxu0 %v2017
    %v2152 = vpop.f32.mrf.mxu0
    %v2153 = vadd.f32 %v657, %v2152
    %v2154 = vpop.f32.mrf.mxu0
    %v2155 = vpop.f32.mrf.mxu0
    %v2156 = vadd.f32 %v657, %v2155
    %v2157 = vpop.f32.mrf.mxu0
    %2158 = vmatprep.mubr.bf16.mxu0 0
    %2159 = vmatmul.mubr.bf16.gmra.mxu0 %v2018
    %v2160 = vpop.f32.mrf.mxu0
    %v2161 = vadd.f32 %v657, %v2160
    %v2162 = vpop.f32.mrf.mxu0
    %v2163 = vpop.f32.mrf.mxu0
    %v2164 = vadd.f32 %v657, %v2163
    %v2165 = vpop.f32.mrf.mxu0
    %2166 = vmatprep.mubr.bf16.mxu0 0
    %2167 = vmatmul.mubr.bf16.gmra.mxu0 %v2019
    %v2168 = vpop.f32.mrf.mxu0
    %v2169 = vadd.f32 %v657, %v2168
    %v2170 = vpop.f32.mrf.mxu0
    %v2171 = vpop.f32.mrf.mxu0
    %v2172 = vadd.f32 %v657, %v2171
    %v2173 = vpop.f32.mrf.mxu0
    %2174 = vmatprep.mubr.bf16.mxu0 0
    %2175 = vmatmul.mubr.bf16.gmra.mxu0 %v2020
    %v2176 = vpop.f32.mrf.mxu0
    %v2177 = vadd.f32 %v657, %v2176
    %v2178 = vpop.f32.mrf.mxu0
    %v2179 = vpop.f32.mrf.mxu0
    %v2180 = vadd.f32 %v657, %v2179
    %v2181 = vpop.f32.mrf.mxu0
    %2182 = vmatprep.mubr.bf16.mxu0 0
    %2183 = vmatmul.mubr.bf16.gmra.mxu0 %v2021
    %v2184 = vpop.f32.mrf.mxu0
    %v2185 = vadd.f32 %v657, %v2184
    %v2186 = vpop.f32.mrf.mxu0
    %v2187 = vpop.f32.mrf.mxu0
    %v2188 = vadd.f32 %v657, %v2187
    %v2189 = vpop.f32.mrf.mxu0
    %2190 = vmatprep.mubr.bf16.mxu0 0
    %2191 = vmatmul.mubr.bf16.gmra.mxu0 %v2022
    %v2192 = vpop.f32.mrf.mxu0
    %v2193 = vadd.f32 %v657, %v2192
    %v2194 = vpop.f32.mrf.mxu0
    %v2195 = vpop.f32.mrf.mxu0
    %v2196 = vadd.f32 %v657, %v2195
    %v2197 = vpop.f32.mrf.mxu0
    %2198 = vmatprep.mubr.bf16.mxu0 0
    %2199 = vmatmul.mubr.bf16.gmra.mxu0 %v2023
    %v2200 = vpop.f32.mrf.mxu0
    %v2201 = vadd.f32 %v657, %v2200
    %v2202 = vpop.f32.mrf.mxu0
    %v2203 = vpop.f32.mrf.mxu0
    %v2204 = vadd.f32 %v657, %v2203
    %v2205 = vpop.f32.mrf.mxu0
    %2206 = vmatprep.mubr.bf16.mxu0 0
    %2207 = vmatmul.mubr.bf16.gmra.mxu0 %v2024
    %v2208 = vpop.f32.mrf.mxu0
    %v2209 = vadd.f32 %v657, %v2208
    %v2210 = vpop.f32.mrf.mxu0
    %v2211 = vpop.f32.mrf.mxu0
    %v2212 = vadd.f32 %v657, %v2211
    %v2213 = vpop.f32.mrf.mxu0
    %2214 = vmatprep.mubr.bf16.mxu0 0
    %2215 = vmatmul.mubr.bf16.gmra.mxu0 %v2025
    %v2216 = vpop.f32.mrf.mxu0
    %v2217 = vadd.f32 %v657, %v2216
    %v2218 = vpop.f32.mrf.mxu0
    %v2219 = vpop.f32.mrf.mxu0
    %v2220 = vadd.f32 %v657, %v2219
    %v2221 = vpop.f32.mrf.mxu0
    %2222 = vmatprep.mubr.bf16.mxu0 0
    %2223 = vmatmul.mubr.bf16.gmra.mxu0 %v2026
    %v2224 = vpop.f32.mrf.mxu0
    %v2225 = vadd.f32 %v657, %v2224
    %v2226 = vpop.f32.mrf.mxu0
    %v2227 = vpop.f32.mrf.mxu0
    %v2228 = vadd.f32 %v657, %v2227
    %v2229 = vpop.f32.mrf.mxu0
    %2230 = vmatprep.mubr.bf16.mxu0 0
    %2231 = vmatmul.mubr.bf16.gmra.mxu0 %v2027
    %v2232 = vpop.f32.mrf.mxu0
    %v2233 = vadd.f32 %v657, %v2232
    %v2234 = vpop.f32.mrf.mxu0
    %v2235 = vpop.f32.mrf.mxu0
    %v2236 = vadd.f32 %v657, %v2235
    %v2237 = vpop.f32.mrf.mxu0
    %2238 = vmatprep.mubr.bf16.mxu0 0
    %2239 = vmatmul.mubr.bf16.gmra.mxu0 %v2028
    %v2240 = vpop.f32.mrf.mxu0
    %v2241 = vadd.f32 %v657, %v2240
    %v2242 = vpop.f32.mrf.mxu0
    %v2243 = vpop.f32.mrf.mxu0
    %v2244 = vadd.f32 %v657, %v2243
    %v2245 = vpop.f32.mrf.mxu0
    %2246 = vmatprep.mubr.bf16.mxu0 0
    %2247 = vmatmul.mubr.bf16.gmra.mxu0 %v2029
    %v2248 = vpop.f32.mrf.mxu0
    %v2249 = vadd.f32 %v657, %v2248
    %v2250 = vpop.f32.mrf.mxu0
    %v2251 = vpop.f32.mrf.mxu0
    %v2252 = vadd.f32 %v657, %v2251
    %v2253 = vpop.f32.mrf.mxu0
    %2254 = vdwg.mxu0
    %v2255 = vtanh.pop %v2129
    %v2256 = vtanh.pop %v2132
    %v2257 = vtanh.pop %v2137
    %v2258 = vtanh.pop %v2140
    %v2259 = vtanh.pop %v2145
    %v2260 = vtanh.pop %v2148
    %v2261 = vtanh.pop %v2153
    %v2262 = vtanh.pop %v2156
    %v2263 = vtanh.pop %v2161
    %v2264 = vtanh.pop %v2164
    %v2265 = vtanh.pop %v2169
    %v2266 = vtanh.pop %v2172
    %v2267 = vtanh.pop %v2177
    %v2268 = vtanh.pop %v2180
    %v2269 = vtanh.pop %v2185
    %v2270 = vtanh.pop %v2188
    %v2271 = vtanh.pop %v2193
    %v2272 = vtanh.pop %v2196
    %v2273 = vtanh.pop %v2201
    %v2274 = vtanh.pop %v2204
    %v2275 = vtanh.pop %v2209
    %v2276 = vtanh.pop %v2212
    %v2277 = vtanh.pop %v2217
    %v2278 = vtanh.pop %v2220
    %v2279 = vtanh.pop %v2225
    %v2280 = vtanh.pop %v2228
    %v2281 = vtanh.pop %v2233
    %v2282 = vtanh.pop %v2236
    %v2283 = vtanh.pop %v2241
    %v2284 = vtanh.pop %v2244
    %v2285 = vtanh.pop %v2249
    %v2286 = vtanh.pop %v2252
    %v2287 = vpack.c.bf16 %v2256, %v2255
    %v2288 = vpack.c.bf16 %v2258, %v2257
    %v2289 = vpack.c.bf16 %v2260, %v2259
    %v2290 = vpack.c.bf16 %v2262, %v2261
    %v2291 = vpack.c.bf16 %v2264, %v2263
    %v2292 = vpack.c.bf16 %v2266, %v2265
    %v2293 = vpack.c.bf16 %v2268, %v2267
    %v2294 = vpack.c.bf16 %v2270, %v2269
    %v2295 = vpack.c.bf16 %v2272, %v2271
    %v2296 = vpack.c.bf16 %v2274, %v2273
    %v2297 = vpack.c.bf16 %v2276, %v2275
    %v2298 = vpack.c.bf16 %v2278, %v2277
    %v2299 = vpack.c.bf16 %v2280, %v2279
    %v2300 = vpack.c.bf16 %v2282, %v2281
    %v2301 = vpack.c.bf16 %v2284, %v2283
    %v2302 = vpack.c.bf16 %v2286, %v2285
    %v2303 = vld [vmem:[%s7] sm:$0xf]
    %v2304 = vld [vmem:[%s7 + $0x4] sm:$0xf]
    %v2305 = vld [vmem:[%s7 + $0x8] sm:$0xf]
    %v2306 = vld [vmem:[%s7 + $0xc] sm:$0xf]
    %v2307 = vld [vmem:[%s7 + $0x10] sm:$0xf]
    %v2308 = vld [vmem:[%s7 + $0x14] sm:$0xf]
    %v2309 = vld [vmem:[%s7 + $0x18] sm:$0xf]
    %v2310 = vld [vmem:[%s7 + $0x1c] sm:$0xf]
    %v2311 = vld [vmem:[%s7 + $0x20] sm:$0xf]
    %v2312 = vld [vmem:[%s7 + $0x24] sm:$0xf]
    %v2313 = vld [vmem:[%s7 + $0x28] sm:$0xf]
    %v2314 = vld [vmem:[%s7 + $0x2c] sm:$0xf]
    %v2315 = vld [vmem:[%s7 + $0x30] sm:$0xf]
    %v2316 = vld [vmem:[%s7 + $0x34] sm:$0xf]
    %v2317 = vld [vmem:[%s7 + $0x38] sm:$0xf]
    %v2318 = vld [vmem:[%s7 + $0x3c] sm:$0xf]
    %v2335 = vunpack.c.l.b16 %v2303
    %v2336 = vunpack.c.l.b16 %v2304
    %v2337 = vunpack.c.l.b16 %v2305
    %v2338 = vunpack.c.l.b16 %v2306
    %v2339 = vunpack.c.l.b16 %v2307
    %v2340 = vunpack.c.l.b16 %v2308
    %v2341 = vunpack.c.l.b16 %v2309
    %v2342 = vunpack.c.l.b16 %v2310
    %v2343 = vunpack.c.l.b16 %v2311
    %v2344 = vunpack.c.l.b16 %v2312
    %v2345 = vunpack.c.l.b16 %v2313
    %v2346 = vunpack.c.l.b16 %v2314
    %v2347 = vunpack.c.l.b16 %v2315
    %v2348 = vunpack.c.l.b16 %v2316
    %v2349 = vunpack.c.l.b16 %v2317
    %v2350 = vunpack.c.l.b16 %v2318
    %v2351 = vpack.c.b16 %v2336, %v2335
    %v2352 = vpack.c.b16 %v2338, %v2337
    %v2353 = vpack.c.b16 %v2340, %v2339
    %v2354 = vpack.c.b16 %v2342, %v2341
    %v2355 = vpack.c.b16 %v2344, %v2343
    %v2356 = vpack.c.b16 %v2346, %v2345
    %v2357 = vpack.c.b16 %v2348, %v2347
    %v2358 = vpack.c.b16 %v2350, %v2349
    %2367 = vmatprep.subr.bf16.mxu0 0
    %2368 = vmatpush1.bf16.msra.mxu0 %v2358
    %2369 = vmatprep.subr.bf16.mxu0 0
    %2370 = vmatpush1.bf16.msra.mxu0 %v2357
    %2371 = vmatprep.subr.bf16.mxu0 0
    %2372 = vmatpush1.bf16.msra.mxu0 %v2356
    %2373 = vmatprep.subr.bf16.mxu0 0
    %2374 = vmatpush1.bf16.msra.mxu0 %v2355
    %2375 = vmatprep.subr.bf16.mxu0 0
    %2376 = vmatpush1.bf16.msra.mxu0 %v2354
    %2377 = vmatprep.subr.bf16.mxu0 0
    %2378 = vmatpush1.bf16.msra.mxu0 %v2353
    %2379 = vmatprep.subr.bf16.mxu0 0
    %2380 = vmatpush1.bf16.msra.mxu0 %v2352
    %2381 = vmatprep.subr.bf16.mxu0 0
    %2382 = vmatpush1.bf16.msra.mxu0 %v2351
    %2383 = vmatprep.subr.bf16.mxu0 0
    %2384 = vmatpush2.bf16.msra.mxu0 0
    %2385 = vmatprep.subr.bf16.mxu0 0
    %2386 = vmatpush2.bf16.msra.mxu0 0
    %2387 = vmatprep.subr.bf16.mxu0 0
    %2388 = vmatpush2.bf16.msra.mxu0 0
    %2389 = vmatprep.subr.bf16.mxu0 0
    %2390 = vmatpush2.bf16.msra.mxu0 0
    %2391 = vmatprep.subr.bf16.mxu0 0
    %2392 = vmatpush2.bf16.msra.mxu0 0
    %2393 = vmatprep.subr.bf16.mxu0 0
    %2394 = vmatpush2.bf16.msra.mxu0 0
    %2395 = vmatprep.subr.bf16.mxu0 0
    %2396 = vmatpush2.bf16.msra.mxu0 0
    %2397 = vmatprep.subr.bf16.mxu0 0
    %2398 = vmatpush2.bf16.msra.mxu0 0
    %2399 = vmatprep.mubr.bf16.mxu0 0
    %2400 = vmatmul.mubr.bf16.gmra.mxu0 %v2287
    %v2401 = vpop.f32.mrf.mxu0
    %v2402 = vadd.f32 %v936, %v2401
    %v2403 = vpop.f32.mrf.mxu0
    %v2404 = vpop.f32.mrf.mxu0
    %v2405 = vadd.f32 %v936, %v2404
    %v2406 = vpop.f32.mrf.mxu0
    %2407 = vmatprep.mubr.bf16.mxu0 0
    %2408 = vmatmul.mubr.bf16.gmra.mxu0 %v2288
    %v2409 = vpop.f32.mrf.mxu0
    %v2410 = vadd.f32 %v936, %v2409
    %v2411 = vpop.f32.mrf.mxu0
    %v2412 = vpop.f32.mrf.mxu0
    %v2413 = vadd.f32 %v936, %v2412
    %v2414 = vpop.f32.mrf.mxu0
    %2415 = vmatprep.mubr.bf16.mxu0 0
    %2416 = vmatmul.mubr.bf16.gmra.mxu0 %v2289
    %v2417 = vpop.f32.mrf.mxu0
    %v2418 = vadd.f32 %v936, %v2417
    %v2419 = vpop.f32.mrf.mxu0
    %v2420 = vpop.f32.mrf.mxu0
    %v2421 = vadd.f32 %v936, %v2420
    %v2422 = vpop.f32.mrf.mxu0
    %2423 = vmatprep.mubr.bf16.mxu0 0
    %2424 = vmatmul.mubr.bf16.gmra.mxu0 %v2290
    %v2425 = vpop.f32.mrf.mxu0
    %v2426 = vadd.f32 %v936, %v2425
    %v2427 = vpop.f32.mrf.mxu0
    %v2428 = vpop.f32.mrf.mxu0
    %v2429 = vadd.f32 %v936, %v2428
    %v2430 = vpop.f32.mrf.mxu0
    %2431 = vmatprep.mubr.bf16.mxu0 0
    %2432 = vmatmul.mubr.bf16.gmra.mxu0 %v2291
    %v2433 = vpop.f32.mrf.mxu0
    %v2434 = vadd.f32 %v936, %v2433
    %v2435 = vpop.f32.mrf.mxu0
    %v2436 = vpop.f32.mrf.mxu0
    %v2437 = vadd.f32 %v936, %v2436
    %v2438 = vpop.f32.mrf.mxu0
    %2439 = vmatprep.mubr.bf16.mxu0 0
    %2440 = vmatmul.mubr.bf16.gmra.mxu0 %v2292
    %v2441 = vpop.f32.mrf.mxu0
    %v2442 = vadd.f32 %v936, %v2441
    %v2443 = vpop.f32.mrf.mxu0
    %v2444 = vpop.f32.mrf.mxu0
    %v2445 = vadd.f32 %v936, %v2444
    %v2446 = vpop.f32.mrf.mxu0
    %2447 = vmatprep.mubr.bf16.mxu0 0
    %2448 = vmatmul.mubr.bf16.gmra.mxu0 %v2293
    %v2449 = vpop.f32.mrf.mxu0
    %v2450 = vadd.f32 %v936, %v2449
    %v2451 = vpop.f32.mrf.mxu0
    %v2452 = vpop.f32.mrf.mxu0
    %v2453 = vadd.f32 %v936, %v2452
    %v2454 = vpop.f32.mrf.mxu0
    %2455 = vmatprep.mubr.bf16.mxu0 0
    %2456 = vmatmul.mubr.bf16.gmra.mxu0 %v2294
    %v2457 = vpop.f32.mrf.mxu0
    %v2458 = vadd.f32 %v936, %v2457
    %v2459 = vpop.f32.mrf.mxu0
    %v2460 = vpop.f32.mrf.mxu0
    %v2461 = vadd.f32 %v936, %v2460
    %v2462 = vpop.f32.mrf.mxu0
    %2463 = vmatprep.mubr.bf16.mxu0 0
    %2464 = vmatmul.mubr.bf16.gmra.mxu0 %v2295
    %v2465 = vpop.f32.mrf.mxu0
    %v2466 = vadd.f32 %v936, %v2465
    %v2467 = vpop.f32.mrf.mxu0
    %v2468 = vpop.f32.mrf.mxu0
    %v2469 = vadd.f32 %v936, %v2468
    %v2470 = vpop.f32.mrf.mxu0
    %2471 = vmatprep.mubr.bf16.mxu0 0
    %2472 = vmatmul.mubr.bf16.gmra.mxu0 %v2296
    %v2473 = vpop.f32.mrf.mxu0
    %v2474 = vadd.f32 %v936, %v2473
    %v2475 = vpop.f32.mrf.mxu0
    %v2476 = vpop.f32.mrf.mxu0
    %v2477 = vadd.f32 %v936, %v2476
    %v2478 = vpop.f32.mrf.mxu0
    %2479 = vmatprep.mubr.bf16.mxu0 0
    %2480 = vmatmul.mubr.bf16.gmra.mxu0 %v2297
    %v2481 = vpop.f32.mrf.mxu0
    %v2482 = vadd.f32 %v936, %v2481
    %v2483 = vpop.f32.mrf.mxu0
    %v2484 = vpop.f32.mrf.mxu0
    %v2485 = vadd.f32 %v936, %v2484
    %v2486 = vpop.f32.mrf.mxu0
    %2487 = vmatprep.mubr.bf16.mxu0 0
    %2488 = vmatmul.mubr.bf16.gmra.mxu0 %v2298
    %v2489 = vpop.f32.mrf.mxu0
    %v2490 = vadd.f32 %v936, %v2489
    %v2491 = vpop.f32.mrf.mxu0
    %v2492 = vpop.f32.mrf.mxu0
    %v2493 = vadd.f32 %v936, %v2492
    %v2494 = vpop.f32.mrf.mxu0
    %2495 = vmatprep.mubr.bf16.mxu0 0
    %2496 = vmatmul.mubr.bf16.gmra.mxu0 %v2299
    %v2497 = vpop.f32.mrf.mxu0
    %v2498 = vadd.f32 %v936, %v2497
    %v2499 = vpop.f32.mrf.mxu0
    %v2500 = vpop.f32.mrf.mxu0
    %v2501 = vadd.f32 %v936, %v2500
    %v2502 = vpop.f32.mrf.mxu0
    %2503 = vmatprep.mubr.bf16.mxu0 0
    %2504 = vmatmul.mubr.bf16.gmra.mxu0 %v2300
    %v2505 = vpop.f32.mrf.mxu0
    %v2506 = vadd.f32 %v936, %v2505
    %v2507 = vpop.f32.mrf.mxu0
    %v2508 = vpop.f32.mrf.mxu0
    %v2509 = vadd.f32 %v936, %v2508
    %v2510 = vpop.f32.mrf.mxu0
    %2511 = vmatprep.mubr.bf16.mxu0 0
    %2512 = vmatmul.mubr.bf16.gmra.mxu0 %v2301
    %v2513 = vpop.f32.mrf.mxu0
    %v2514 = vadd.f32 %v936, %v2513
    %v2515 = vpop.f32.mrf.mxu0
    %v2516 = vpop.f32.mrf.mxu0
    %v2517 = vadd.f32 %v936, %v2516
    %v2518 = vpop.f32.mrf.mxu0
    %2519 = vmatprep.mubr.bf16.mxu0 0
    %2520 = vmatmul.mubr.bf16.gmra.mxu0 %v2302
    %v2521 = vpop.f32.mrf.mxu0
    %v2522 = vadd.f32 %v936, %v2521
    %v2523 = vpop.f32.mrf.mxu0
    %v2524 = vpop.f32.mrf.mxu0
    %v2525 = vadd.f32 %v936, %v2524
    %v2526 = vpop.f32.mrf.mxu0
    %2527 = vdwg.mxu0
    %v2528 = vtanh.pop %v2402
    %v2529 = vtanh.pop %v2405
    %v2530 = vtanh.pop %v2410
    %v2531 = vtanh.pop %v2413
    %v2532 = vtanh.pop %v2418
    %v2533 = vtanh.pop %v2421
    %v2534 = vtanh.pop %v2426
    %v2535 = vtanh.pop %v2429
    %v2536 = vtanh.pop %v2434
    %v2537 = vtanh.pop %v2437
    %v2538 = vtanh.pop %v2442
    %v2539 = vtanh.pop %v2445
    %v2540 = vtanh.pop %v2450
    %v2541 = vtanh.pop %v2453
    %v2542 = vtanh.pop %v2458
    %v2543 = vtanh.pop %v2461
    %v2544 = vtanh.pop %v2466
    %v2545 = vtanh.pop %v2469
    %v2546 = vtanh.pop %v2474
    %v2547 = vtanh.pop %v2477
    %v2548 = vtanh.pop %v2482
    %v2549 = vtanh.pop %v2485
    %v2550 = vtanh.pop %v2490
    %v2551 = vtanh.pop %v2493
    %v2552 = vtanh.pop %v2498
    %v2553 = vtanh.pop %v2501
    %v2554 = vtanh.pop %v2506
    %v2555 = vtanh.pop %v2509
    %v2556 = vtanh.pop %v2514
    %v2557 = vtanh.pop %v2517
    %v2558 = vtanh.pop %v2522
    %v2559 = vtanh.pop %v2525
    %v2560 = vpack.c.bf16 %v2529, %v2528
    %v2561 = vpack.c.bf16 %v2531, %v2530
    %v2562 = vpack.c.bf16 %v2533, %v2532
    %v2563 = vpack.c.bf16 %v2535, %v2534
    %v2564 = vpack.c.bf16 %v2537, %v2536
    %v2565 = vpack.c.bf16 %v2539, %v2538
    %v2566 = vpack.c.bf16 %v2541, %v2540
    %v2567 = vpack.c.bf16 %v2543, %v2542
    %v2568 = vpack.c.bf16 %v2545, %v2544
    %v2569 = vpack.c.bf16 %v2547, %v2546
    %v2570 = vpack.c.bf16 %v2549, %v2548
    %v2571 = vpack.c.bf16 %v2551, %v2550
    %v2572 = vpack.c.bf16 %v2553, %v2552
    %v2573 = vpack.c.bf16 %v2555, %v2554
    %v2574 = vpack.c.bf16 %v2557, %v2556
    %v2575 = vpack.c.bf16 %v2559, %v2558
    %v2576 = vld [vmem:[%s9] sm:$0xf]
    %v2577 = vld [vmem:[%s9 + $0x4] sm:$0xf]
    %v2578 = vld [vmem:[%s9 + $0x8] sm:$0xf]
    %v2579 = vld [vmem:[%s9 + $0xc] sm:$0xf]
    %v2580 = vld [vmem:[%s9 + $0x10] sm:$0xf]
    %v2581 = vld [vmem:[%s9 + $0x14] sm:$0xf]
    %v2582 = vld [vmem:[%s9 + $0x18] sm:$0xf]
    %v2583 = vld [vmem:[%s9 + $0x1c] sm:$0xf]
    %v2584 = vld [vmem:[%s9 + $0x20] sm:$0xf]
    %v2585 = vld [vmem:[%s9 + $0x24] sm:$0xf]
    %v2586 = vld [vmem:[%s9 + $0x28] sm:$0xf]
    %v2587 = vld [vmem:[%s9 + $0x2c] sm:$0xf]
    %v2588 = vld [vmem:[%s9 + $0x30] sm:$0xf]
    %v2589 = vld [vmem:[%s9 + $0x34] sm:$0xf]
    %v2590 = vld [vmem:[%s9 + $0x38] sm:$0xf]
    %v2591 = vld [vmem:[%s9 + $0x3c] sm:$0xf]
    %v2608 = vunpack.c.l.b16 %v2576
    %v2609 = vunpack.c.l.b16 %v2577
    %v2610 = vunpack.c.l.b16 %v2578
    %v2611 = vunpack.c.l.b16 %v2579
    %v2612 = vunpack.c.l.b16 %v2580
    %v2613 = vunpack.c.l.b16 %v2581
    %v2614 = vunpack.c.l.b16 %v2582
    %v2615 = vunpack.c.l.b16 %v2583
    %v2616 = vunpack.c.l.b16 %v2584
    %v2617 = vunpack.c.l.b16 %v2585
    %v2618 = vunpack.c.l.b16 %v2586
    %v2619 = vunpack.c.l.b16 %v2587
    %v2620 = vunpack.c.l.b16 %v2588
    %v2621 = vunpack.c.l.b16 %v2589
    %v2622 = vunpack.c.l.b16 %v2590
    %v2623 = vunpack.c.l.b16 %v2591
    %v2624 = vpack.c.b16 %v2609, %v2608
    %v2625 = vpack.c.b16 %v2611, %v2610
    %v2626 = vpack.c.b16 %v2613, %v2612
    %v2627 = vpack.c.b16 %v2615, %v2614
    %v2628 = vpack.c.b16 %v2617, %v2616
    %v2629 = vpack.c.b16 %v2619, %v2618
    %v2630 = vpack.c.b16 %v2621, %v2620
    %v2631 = vpack.c.b16 %v2623, %v2622
    %2640 = vmatprep.subr.bf16.mxu0 0
    %2641 = vmatpush1.bf16.msra.mxu0 %v2631
    %2642 = vmatprep.subr.bf16.mxu0 0
    %2643 = vmatpush1.bf16.msra.mxu0 %v2630
    %2644 = vmatprep.subr.bf16.mxu0 0
    %2645 = vmatpush1.bf16.msra.mxu0 %v2629
    %2646 = vmatprep.subr.bf16.mxu0 0
    %2647 = vmatpush1.bf16.msra.mxu0 %v2628
    %2648 = vmatprep.subr.bf16.mxu0 0
    %2649 = vmatpush1.bf16.msra.mxu0 %v2627
    %2650 = vmatprep.subr.bf16.mxu0 0
    %2651 = vmatpush1.bf16.msra.mxu0 %v2626
    %2652 = vmatprep.subr.bf16.mxu0 0
    %2653 = vmatpush1.bf16.msra.mxu0 %v2625
    %2654 = vmatprep.subr.bf16.mxu0 0
    %2655 = vmatpush1.bf16.msra.mxu0 %v2624
    %2656 = vmatprep.subr.bf16.mxu0 0
    %2657 = vmatpush2.bf16.msra.mxu0 0
    %2658 = vmatprep.subr.bf16.mxu0 0
    %2659 = vmatpush2.bf16.msra.mxu0 0
    %2660 = vmatprep.subr.bf16.mxu0 0
    %2661 = vmatpush2.bf16.msra.mxu0 0
    %2662 = vmatprep.subr.bf16.mxu0 0
    %2663 = vmatpush2.bf16.msra.mxu0 0
    %2664 = vmatprep.subr.bf16.mxu0 0
    %2665 = vmatpush2.bf16.msra.mxu0 0
    %2666 = vmatprep.subr.bf16.mxu0 0
    %2667 = vmatpush2.bf16.msra.mxu0 0
    %2668 = vmatprep.subr.bf16.mxu0 0
    %2669 = vmatpush2.bf16.msra.mxu0 0
    %2670 = vmatprep.subr.bf16.mxu0 0
    %2671 = vmatpush2.bf16.msra.mxu0 0
    %2672 = vmatprep.mubr.bf16.mxu0 0
    %2673 = vmatmul.mubr.bf16.gmra.mxu0 %v2560
    %v2674 = vpop.f32.mrf.mxu0
    %v2675 = vadd.f32 0.0, %v2674
    %v2676 = vpop.f32.mrf.mxu0
    %v2677 = vpop.f32.mrf.mxu0
    %v2678 = vadd.f32 0.0, %v2677
    %v2679 = vpop.f32.mrf.mxu0
    %2680 = vmatprep.mubr.bf16.mxu0 0
    %2681 = vmatmul.mubr.bf16.gmra.mxu0 %v2561
    %v2682 = vpop.f32.mrf.mxu0
    %v2683 = vadd.f32 0.0, %v2682
    %v2684 = vpop.f32.mrf.mxu0
    %v2685 = vpop.f32.mrf.mxu0
    %v2686 = vadd.f32 0.0, %v2685
    %v2687 = vpop.f32.mrf.mxu0
    %2688 = vmatprep.mubr.bf16.mxu0 0
    %2689 = vmatmul.mubr.bf16.gmra.mxu0 %v2562
    %v2690 = vpop.f32.mrf.mxu0
    %v2691 = vadd.f32 0.0, %v2690
    %v2692 = vpop.f32.mrf.mxu0
    %v2693 = vpop.f32.mrf.mxu0
    %v2694 = vadd.f32 0.0, %v2693
    %v2695 = vpop.f32.mrf.mxu0
    %2696 = vmatprep.mubr.bf16.mxu0 0
    %2697 = vmatmul.mubr.bf16.gmra.mxu0 %v2563
    %v2698 = vpop.f32.mrf.mxu0
    %v2699 = vadd.f32 0.0, %v2698
    %v2700 = vpop.f32.mrf.mxu0
    %v2701 = vpop.f32.mrf.mxu0
    %v2702 = vadd.f32 0.0, %v2701
    %v2703 = vpop.f32.mrf.mxu0
    %2704 = vmatprep.mubr.bf16.mxu0 0
    %2705 = vmatmul.mubr.bf16.gmra.mxu0 %v2564
    %v2706 = vpop.f32.mrf.mxu0
    %v2707 = vadd.f32 0.0, %v2706
    %v2708 = vpop.f32.mrf.mxu0
    %v2709 = vpop.f32.mrf.mxu0
    %v2710 = vadd.f32 0.0, %v2709
    %v2711 = vpop.f32.mrf.mxu0
    %2712 = vmatprep.mubr.bf16.mxu0 0
    %2713 = vmatmul.mubr.bf16.gmra.mxu0 %v2565
    %v2714 = vpop.f32.mrf.mxu0
    %v2715 = vadd.f32 0.0, %v2714
    %v2716 = vpop.f32.mrf.mxu0
    %v2717 = vpop.f32.mrf.mxu0
    %v2718 = vadd.f32 0.0, %v2717
    %v2719 = vpop.f32.mrf.mxu0
    %2720 = vmatprep.mubr.bf16.mxu0 0
    %2721 = vmatmul.mubr.bf16.gmra.mxu0 %v2566
    %v2722 = vpop.f32.mrf.mxu0
    %v2723 = vadd.f32 0.0, %v2722
    %v2724 = vpop.f32.mrf.mxu0
    %v2725 = vpop.f32.mrf.mxu0
    %v2726 = vadd.f32 0.0, %v2725
    %v2727 = vpop.f32.mrf.mxu0
    %2728 = vmatprep.mubr.bf16.mxu0 0
    %2729 = vmatmul.mubr.bf16.gmra.mxu0 %v2567
    %v2730 = vpop.f32.mrf.mxu0
    %v2731 = vadd.f32 0.0, %v2730
    %v2732 = vpop.f32.mrf.mxu0
    %v2733 = vpop.f32.mrf.mxu0
    %v2734 = vadd.f32 0.0, %v2733
    %v2735 = vpop.f32.mrf.mxu0
    %2736 = vmatprep.mubr.bf16.mxu0 0
    %2737 = vmatmul.mubr.bf16.gmra.mxu0 %v2568
    %v2738 = vpop.f32.mrf.mxu0
    %v2739 = vadd.f32 0.0, %v2738
    %v2740 = vpop.f32.mrf.mxu0
    %v2741 = vpop.f32.mrf.mxu0
    %v2742 = vadd.f32 0.0, %v2741
    %v2743 = vpop.f32.mrf.mxu0
    %2744 = vmatprep.mubr.bf16.mxu0 0
    %2745 = vmatmul.mubr.bf16.gmra.mxu0 %v2569
    %v2746 = vpop.f32.mrf.mxu0
    %v2747 = vadd.f32 0.0, %v2746
    %v2748 = vpop.f32.mrf.mxu0
    %v2749 = vpop.f32.mrf.mxu0
    %v2750 = vadd.f32 0.0, %v2749
    %v2751 = vpop.f32.mrf.mxu0
    %2752 = vmatprep.mubr.bf16.mxu0 0
    %2753 = vmatmul.mubr.bf16.gmra.mxu0 %v2570
    %v2754 = vpop.f32.mrf.mxu0
    %v2755 = vadd.f32 0.0, %v2754
    %v2756 = vpop.f32.mrf.mxu0
    %v2757 = vpop.f32.mrf.mxu0
    %v2758 = vadd.f32 0.0, %v2757
    %v2759 = vpop.f32.mrf.mxu0
    %2760 = vmatprep.mubr.bf16.mxu0 0
    %2761 = vmatmul.mubr.bf16.gmra.mxu0 %v2571
    %v2762 = vpop.f32.mrf.mxu0
    %v2763 = vadd.f32 0.0, %v2762
    %v2764 = vpop.f32.mrf.mxu0
    %v2765 = vpop.f32.mrf.mxu0
    %v2766 = vadd.f32 0.0, %v2765
    %v2767 = vpop.f32.mrf.mxu0
    %2768 = vmatprep.mubr.bf16.mxu0 0
    %2769 = vmatmul.mubr.bf16.gmra.mxu0 %v2572
    %v2770 = vpop.f32.mrf.mxu0
    %v2771 = vadd.f32 0.0, %v2770
    %v2772 = vpop.f32.mrf.mxu0
    %v2773 = vpop.f32.mrf.mxu0
    %v2774 = vadd.f32 0.0, %v2773
    %v2775 = vpop.f32.mrf.mxu0
    %2776 = vmatprep.mubr.bf16.mxu0 0
    %2777 = vmatmul.mubr.bf16.gmra.mxu0 %v2573
    %v2778 = vpop.f32.mrf.mxu0
    %v2779 = vadd.f32 0.0, %v2778
    %v2780 = vpop.f32.mrf.mxu0
    %v2781 = vpop.f32.mrf.mxu0
    %v2782 = vadd.f32 0.0, %v2781
    %v2783 = vpop.f32.mrf.mxu0
    %2784 = vmatprep.mubr.bf16.mxu0 0
    %2785 = vmatmul.mubr.bf16.gmra.mxu0 %v2574
    %v2786 = vpop.f32.mrf.mxu0
    %v2787 = vadd.f32 0.0, %v2786
    %v2788 = vpop.f32.mrf.mxu0
    %v2789 = vpop.f32.mrf.mxu0
    %v2790 = vadd.f32 0.0, %v2789
    %v2791 = vpop.f32.mrf.mxu0
    %2792 = vmatprep.mubr.bf16.mxu0 0
    %2793 = vmatmul.mubr.bf16.gmra.mxu0 %v2575
    %v2794 = vpop.f32.mrf.mxu0
    %v2795 = vadd.f32 0.0, %v2794
    %v2796 = vpop.f32.mrf.mxu0
    %v2797 = vpop.f32.mrf.mxu0
    %v2798 = vadd.f32 0.0, %v2797
    %v2799 = vpop.f32.mrf.mxu0
    %2800 = vdwg.mxu0
    %s2801 = scalar_lea.vmem [#allocation2], 256
    %2802 = vst [vmem:[%s2801] sm:$0xff] %v2675
    %2803 = vst [vmem:[%s2801 + $0x8] sm:$0xff] %v2678
    %2804 = vst [vmem:[%s2801 + $0x10] sm:$0xff] %v2683
    %2805 = vst [vmem:[%s2801 + $0x18] sm:$0xff] %v2686
    %2806 = vst [vmem:[%s2801 + $0x20] sm:$0xff] %v2691
    %2807 = vst [vmem:[%s2801 + $0x28] sm:$0xff] %v2694
    %2808 = vst [vmem:[%s2801 + $0x30] sm:$0xff] %v2699
    %2809 = vst [vmem:[%s2801 + $0x38] sm:$0xff] %v2702
    %2810 = vst [vmem:[%s2801 + $0x40] sm:$0xff] %v2707
    %2811 = vst [vmem:[%s2801 + $0x48] sm:$0xff] %v2710
    %2812 = vst [vmem:[%s2801 + $0x50] sm:$0xff] %v2715
    %2813 = vst [vmem:[%s2801 + $0x58] sm:$0xff] %v2718
    %2814 = vst [vmem:[%s2801 + $0x60] sm:$0xff] %v2723
    %2815 = vst [vmem:[%s2801 + $0x68] sm:$0xff] %v2726
    %2816 = vst [vmem:[%s2801 + $0x70] sm:$0xff] %v2731
    %2817 = vst [vmem:[%s2801 + $0x78] sm:$0xff] %v2734
    %2818 = vst [vmem:[%s2801 + $0x80] sm:$0xff] %v2739
    %2819 = vst [vmem:[%s2801 + $0x88] sm:$0xff] %v2742
    %2820 = vst [vmem:[%s2801 + $0x90] sm:$0xff] %v2747
    %2821 = vst [vmem:[%s2801 + $0x98] sm:$0xff] %v2750
    %2822 = vst [vmem:[%s2801 + $0xa0] sm:$0xff] %v2755
    %2823 = vst [vmem:[%s2801 + $0xa8] sm:$0xff] %v2758
    %2824 = vst [vmem:[%s2801 + $0xb0] sm:$0xff] %v2763
    %2825 = vst [vmem:[%s2801 + $0xb8] sm:$0xff] %v2766
    %2826 = vst [vmem:[%s2801 + $0xc0] sm:$0xff] %v2771
    %2827 = vst [vmem:[%s2801 + $0xc8] sm:$0xff] %v2774
    %2828 = vst [vmem:[%s2801 + $0xd0] sm:$0xff] %v2779
    %2829 = vst [vmem:[%s2801 + $0xd8] sm:$0xff] %v2782
    %2830 = vst [vmem:[%s2801 + $0xe0] sm:$0xff] %v2787
    %2831 = vst [vmem:[%s2801 + $0xe8] sm:$0xff] %v2790
    %2832 = vst [vmem:[%s2801 + $0xf0] sm:$0xff] %v2795
    %2833 = vst [vmem:[%s2801 + $0xf8] sm:$0xff] %v2798
    // Predicated region
    $region42: #{tpu_custom_call.1} parent=1 // pred_check
      _
    $region43: #{tpu_custom_call.1} parent=1 // pred_check_branch
      %2835 = sbr.rel (0) target = $region45
    $region44: #{tpu_custom_call.1} parent=1 // pred_region
      %s2837 = ssub.s32 8192, 8192
      %2838 = vsyncadd [#allocation3], %s2837
      %s2839 = sshll.u32 [#allocation2], 4
      %s2840 = int_to_ptr.vmem [resolvable:$true] %s2839
      %2845 = dma.vmem_to_hbm [thread:$0]  %s2840, 8192, %s10, [#allocation3], 128, 128, 8
    $region45: #{tpu_custom_call.1} parent=1 // pred_fallthru
      _
    // Predicated region
    $region46: #{tpu_custom_call.1} parent=1 // pred_check
      _
    $region47: #{tpu_custom_call.1} parent=1 // pred_check_branch
      %2847 = sbr.rel (0) target = $region49
    $region48: #{tpu_custom_call.1} parent=1 // pred_region
      %2848 = dma.done [#allocation3], 8192
    $region49: #{tpu_custom_call.1} parent=1 // pred_fallthru
      _
    %2849 = vsyncpa [#allocation3], 1

</llo_original>
